<compile_context>
chip_gen: v5e
topology: v5e:2x2
jax: 0.10.0
libtpu: 0.0.40
codegen_flags: <defaults>
</compile_context>

<pallas_src>
import functools

import numpy as np

import jax
import jax.numpy as jnp
from jax.experimental import pallas as pl
from jax.experimental.pallas import tpu as pltpu


INPUT_SIZE = 8 * 2 + 1  # len(INV_BASE_MAP) * 2 + 1 = 17


class Opt:
    """Mimics the fields of `opt` used by DiscriminatorQscoreCNN.__init__."""
    D_num_layer = 3
    D_hidden_size = 32
    D_CNN_kernel = 3
    D_CNN_padding = 1
    oligo_len = 12
    padding_num = 2


def _cdiv(a, b):
    return -(-a // b)


def _round_up(a, m):
    return _cdiv(a, m) * m


# ------------------------------ Pallas kernel ------------------------------ #

def _fused_banded_kernel(*refs, num_layers):
    """Fused (banded-matmul Conv1d + ReLU) stack + Linear(fc_size -> 1).

    refs = (x, W0, b0, W1, b1, ..., fc_w, fc_b, out)
      x    : [Bblk, L0*C0]            (lane-dense flattened input, f32/bf16)
      W_i  : [Lin_i*Cin_i, Lout_i*Cout_i]  banded block-Toeplitz conv weight (bf16)
      b_i  : [1, Lout_i*Cout_i]       tiled bias (f32)
      fc_w : [fc_size, 1]             L-major reorder of torch fc weight (bf16)
      fc_b : [1, 1]                   (f32)
      out  : [Bblk, 1]                (f32)
    """
    x_ref = refs[0]
    conv_refs = refs[1:1 + 2 * num_layers]
    fcw_ref, fcb_ref, o_ref = refs[1 + 2 * num_layers:]

    # bf16 MXU operands, f32 accumulation; elementwise math in f32.
    h = x_ref[...].astype(jnp.bfloat16)                      # [Bblk, L0*C0]
    for layer in range(num_layers):
        w_ref = conv_refs[2 * layer]                         # [Din, Dout] bf16
        b_ref = conv_refs[2 * layer + 1]                     # [1, Dout]  f32
        acc = jnp.dot(h, w_ref[...],
                      preferred_element_type=jnp.float32)    # [Bblk, Dout] f32
        h = jnp.maximum(acc + b_ref[...], 0.0).astype(jnp.bfloat16)

    out = jnp.dot(h, fcw_ref[...],
                  preferred_element_type=jnp.float32)        # [Bblk, 1]
    o_ref[...] = (out + fcb_ref[...]).astype(o_ref.dtype)


# ------------------------------ Param handling ----------------------------- #

def _last_seq_len(opt):
    seq_length = opt.oligo_len + opt.padding_num + 2
    last = seq_length
    for _ in range(opt.D_num_layer):
        last = int(last + 2 * opt.D_CNN_padding - (opt.D_CNN_kernel - 1))
    return last


def init_params(opt, key):
    """Deterministic synthetic parameters matching the torch module's shapes."""
    keys = jax.random.split(key, 2 * opt.D_num_layer + 2)
    convs = []
    # layer1: Conv1d(17, H, K)
    w = 0.1 * jax.random.normal(
        keys[0], (opt.D_hidden_size, INPUT_SIZE, opt.D_CNN_kernel), jnp.float32)
    b = 0.1 * jax.random.normal(keys[1], (opt.D_hidden_size,), jnp.float32)
    convs.append((w, b))
    # hidden: Conv1d(H, H, K) x (num_layers - 1)
    for i in range(1, opt.D_num_layer):
        w = 0.1 * jax.random.normal(
            keys[2 * i], (opt.D_hidden_size, opt.D_hidden_size, opt.D_CNN_kernel),
            jnp.float32)
        b = 0.1 * jax.random.normal(keys[2 * i + 1], (opt.D_hidden_size,), jnp.float32)
        convs.append((w, b))

    fc_size = opt.D_hidden_size * _last_seq_len(opt)
    fc_w = 0.1 * jax.random.normal(keys[-2], (1, fc_size), jnp.float32)
    fc_b = 0.1 * jax.random.normal(keys[-1], (1,), jnp.float32)
    return {"convs": convs, "fc_w": fc_w, "fc_b": fc_b}


def prepare_params(raw, opt, compute_dtype=jnp.bfloat16):
    """One-time layout prep: torch-layout params -> kernel-layout params.

    Conv1d [Cout, Cin, K] -> banded block-Toeplitz [Lin*Cin, Lout*Cout] with the
    zero padding encoded in the band; biases tiled to [1, Lout*Cout]; the FC
    weight is reordered from torch's C-major flatten to L-major [fc_size, 1].
    """
    K = opt.D_CNN_kernel
    pad = opt.D_CNN_padding
    Lin = opt.oligo_len + opt.padding_num + 2

    conv_w, conv_b = [], []
    for w, b in raw["convs"]:
        w_np = np.asarray(w)                       # [Cout, Cin, K]
        b_np = np.asarray(b)                       # [Cout]
        Cout, Cin, _ = w_np.shape
        Lout = int(Lin + 2 * pad - (K - 1))
        M = np.zeros((Lin * Cin, Lout * Cout), np.float32)
        # y[b, lo*Cout+co] = sum_{k,ci, 0<=li<Lin} x[b, li*Cin+ci] * w[co,ci,k],
        #   li = lo + k - pad  (zero padding == rows simply not written)
        for lo in range(Lout):
            for k in range(K):
                li = lo + k - pad
                if 0 <= li < Lin:
                    M[li * Cin:(li + 1) * Cin,
                      lo * Cout:(lo + 1) * Cout] = w_np[:, :, k].T
        conv_w.append(jnp.asarray(M, dtype=compute_dtype))
        conv_b.append(jnp.asarray(np.tile(b_np, Lout)[None, :], dtype=jnp.float32))
        Lin = Lout

    H = raw["convs"][-1][0].shape[0]               # Cout of last conv
    L_last = Lin
    # torch flattens [B, C, L] C-major; our activations are L-major.
    fc_w_np = np.asarray(raw["fc_w"]).reshape(H, L_last).T.reshape(-1, 1)
    fc_b_np = np.asarray(raw["fc_b"]).reshape(1, 1)
    return {"conv_w": tuple(conv_w), "conv_b": tuple(conv_b),
            "fc_w": jnp.asarray(fc_w_np, dtype=compute_dtype),
            "fc_b": jnp.asarray(fc_b_np, dtype=jnp.float32)}


def _flatten_params(prepared):
    flat = []
    for w, b in zip(prepared["conv_w"], prepared["conv_b"]):
        flat.extend([w, b])
    flat.extend([prepared["fc_w"], prepared["fc_b"]])
    return flat


# -------------------------------- Forward ---------------------------------- #

def make_forward(opt, batch_block=512):
    """Builds a jitted forward: (prepared_params, x[B, L, 17]) -> [B, 1].

    batch_block is the MAX rows per grid step (cap chosen so the tile fits
    comfortably under the 32 MiB scoped-VMEM default on v5e/v6e/v7x).  For
    B >= 16 the grid always has >= 2 steps so both v7x TensorCores get work;
    on single-TC v5e/v6e the extra step costs only ~0.35 us.
    """
    num_layers = opt.D_num_layer
    kernel = functools.partial(_fused_banded_kernel, num_layers=num_layers)

    def _choose_grid(B):
        if B <= 8:
            return 8, 1
        min_blocks = 2 if B >= 16 else 1            # feed both v7x TCs
        n = max(min_blocks, _cdiv(B, batch_block))
        block = _round_up(_cdiv(B, n), 8)
        return block, _cdiv(B, block)

    vmem = pltpu.MemorySpace.VMEM

    @jax.jit
    def forward(prepared, x):
        B, L, C = x.shape
        flat = _flatten_params(prepared)
        d_in = flat[0].shape[0]
        assert L * C == d_in, (L, C, d_in)

        # Free row-major reshape; dtype cast happens in-kernel (no extra HBM pass).
        x2 = x.reshape(B, L * C)

        block, nblocks = _choose_grid(B)
        Bp = block * nblocks
        if Bp != B:                                  # only for ragged batches
            x2 = jnp.pad(x2, ((0, Bp - B), (0, 0)))

        # Rough VMEM budget: 2x-buffered input tile + params + live f32/bf16
        # intermediates.  Keep well under the 32 MiB scoped default everywhere.
        d_max = max(p.shape[1] for p in flat)
        est = (2 * block * d_in * x2.dtype.itemsize
               + 2 * sum(int(np.prod(p.shape)) * p.dtype.itemsize for p in flat)
               + 6 * block * d_max * 4)
        if est > 24 * 1024 * 1024:
            raise ValueError(
                f"batch_block={batch_block} needs ~{est >> 20} MiB VMEM; "
                "lower it (v7x has 64 MiB physical / 32 MiB default scoped VMEM).")

        in_specs = [pl.BlockSpec((block, d_in), lambda i: (i, 0),
                                 memory_space=vmem)]
        # Params: full-array blocks with constant index maps -> fetched once,
        # VMEM-resident across the whole grid.
        in_specs += [pl.BlockSpec(p.shape, lambda i: (0, 0), memory_space=vmem)
                     for p in flat]
        out_specs = pl.BlockSpec((block, 1), lambda i: (i, 0), memory_space=vmem)

        out = pl.pallas_call(
            kernel,
            out_shape=jax.ShapeDtypeStruct((Bp, 1), jnp.float32),
            grid=(nblocks,),
            in_specs=in_specs,
            out_specs=out_specs,
            compiler_params=pltpu.CompilerParams(
                dimension_semantics=("parallel",)),
        )(x2, *flat)
        return out[:B] if Bp != B else out

    return forward


# ------------------------------ References --------------------------------- #

def reference_forward(x, raw, opt):
    """Pure-JAX f32 reference reproducing the torch NCL semantics exactly."""
    h = jnp.transpose(x, (0, 2, 1))                    # [B, C, L]
    for w, b in raw["convs"]:
        h = jax.lax.conv_general_dilated(
            h, w, window_strides=(1,),
            padding=[(opt.D_CNN_padding, opt.D_CNN_padding)],
            dimension_numbers=("NCH", "OIH", "NCH"))
        h = jnp.maximum(h + b[None, :, None], 0.0)
    flat = h.reshape(h.shape[0], -1)                   # torch reshape(-1, fc_size)
    return flat @ raw["fc_w"].T + raw["fc_b"]


def reference_forward_bf16(x, raw, opt):
    """Same network with the kernel's quantization (bf16 operands, f32 accum).

    Used for a tight correctness check of the banded-weight layout math.
    """
    h = jnp.transpose(x, (0, 2, 1)).astype(jnp.bfloat16)
    for w, b in raw["convs"]:
        z = jax.lax.conv_general_dilated(
            h, w.astype(jnp.bfloat16), window_strides=(1,),
            padding=[(opt.D_CNN_padding, opt.D_CNN_padding)],
            dimension_numbers=("NCH", "OIH", "NCH"),
            preferred_element_type=jnp.float32)
        h = jnp.maximum(z + b[None, :, None], 0.0).astype(jnp.bfloat16)
    flat = h.reshape(h.shape[0], -1)
    out = jnp.dot(flat, raw["fc_w"].T.astype(jnp.bfloat16),
                  preferred_element_type=jnp.float32)
    return out + raw["fc_b"]


# ---------------------------------- main ------------------------------------ #

if __name__ == "__main__":
    opt = Opt()
    key = jax.random.PRNGKey(0)
    k_param, k_data, k_data2 = jax.random.split(key, 3)

    raw_params = init_params(opt, k_param)
    prepared = prepare_params(raw_params, opt)

    seq_length = opt.oligo_len + opt.padding_num + 2   # 16
    forward = make_forward(opt)

    # Small batch (padded internally to a single 8-row block).
    batch = 2
    x = jax.random.normal(k_data, (batch, seq_length, INPUT_SIZE), jnp.float32)
    out = jax.block_until_ready(forward(prepared, x))
    ref_q = reference_forward_bf16(x, raw_params, opt)
    ref_f = reference_forward(x, raw_params, opt)
    assert out.shape == (batch, 1), out.shape
    assert jnp.allclose(out, ref_q, atol=2e-2, rtol=2e-2), (out, ref_q)
    assert jnp.allclose(out, ref_f, atol=1.5e-1, rtol=1e-1), (out, ref_f)

    # Larger batch: multi-block "parallel" grid (>= 2 blocks feeds both v7x TCs).
    batch2 = 256
    x2 = jax.random.normal(k_data2, (batch2, seq_length, INPUT_SIZE), jnp.float32)
    out2 = jax.block_until_ready(forward(prepared, x2))
    ref2_q = reference_forward_bf16(x2, raw_params, opt)
    ref2_f = reference_forward(x2, raw_params, opt)
    assert out2.shape == (batch2, 1), out2.shape
    assert jnp.allclose(out2, ref2_q, atol=2e-2, rtol=2e-2), (out2, ref2_q)
    assert jnp.allclose(out2, ref2_f, atol=1.5e-1, rtol=1e-1), (out2, ref2_f)

    print("KERNEL_OK")
</pallas_src>

<mosaic_0001>
module attributes {stable_mosaic.version = 11 : i64} {
  func.func @_fused_banded_kernel(%arg0: i32, %arg1: memref<8x272xf32, #tpu.memory_space<vmem>>, %arg2: memref<272x512xbf16, #tpu.memory_space<vmem>>, %arg3: memref<1x512xf32, #tpu.memory_space<vmem>>, %arg4: memref<512x512xbf16, #tpu.memory_space<vmem>>, %arg5: memref<1x512xf32, #tpu.memory_space<vmem>>, %arg6: memref<512x512xbf16, #tpu.memory_space<vmem>>, %arg7: memref<1x512xf32, #tpu.memory_space<vmem>>, %arg8: memref<512x1xbf16, #tpu.memory_space<vmem>>, %arg9: memref<1x1xf32, #tpu.memory_space<vmem>>, %arg10: memref<8x1xf32, #tpu.memory_space<vmem>>) attributes {dimension_semantics = [#tpu.dimension_semantics<parallel>], iteration_bounds = array<i64: 1>, scalar_prefetch = 0 : i64, scratch_operands = 0 : i64, tpu.core_type = #tpu.core_type<tc>, window_params = [{transform_indices = @transform_0, window_bounds = array<i64: 8, 272>}, {pipeline_mode = #tpu.pipeline_mode<synchronous>, transform_indices = @transform_1, window_bounds = array<i64: 272, 512>}, {pipeline_mode = #tpu.pipeline_mode<synchronous>, transform_indices = @transform_2, window_bounds = array<i64: 1, 512>}, {pipeline_mode = #tpu.pipeline_mode<synchronous>, transform_indices = @transform_3, window_bounds = array<i64: 512, 512>}, {pipeline_mode = #tpu.pipeline_mode<synchronous>, transform_indices = @transform_4, window_bounds = array<i64: 1, 512>}, {pipeline_mode = #tpu.pipeline_mode<synchronous>, transform_indices = @transform_5, window_bounds = array<i64: 512, 512>}, {pipeline_mode = #tpu.pipeline_mode<synchronous>, transform_indices = @transform_6, window_bounds = array<i64: 1, 512>}, {pipeline_mode = #tpu.pipeline_mode<synchronous>, transform_indices = @transform_7, window_bounds = array<i64: 512, 1>}, {pipeline_mode = #tpu.pipeline_mode<synchronous>, transform_indices = @transform_8, window_bounds = array<i64: 1, 1>}, {transform_indices = @transform_9, window_bounds = array<i64: 8, 1>}]} {
    %c0 = arith.constant 0 : index
    %c0_0 = arith.constant 0 : index
    %0 = vector.load %arg1[%c0, %c0_0] : memref<8x272xf32, #tpu.memory_space<vmem>>, vector<8x272xf32>
    %1 = arith.truncf %0 : vector<8x272xf32> to vector<8x272xbf16>
    %c0_1 = arith.constant 0 : index
    %c0_2 = arith.constant 0 : index
    %2 = vector.load %arg2[%c0_1, %c0_2] : memref<272x512xbf16, #tpu.memory_space<vmem>>, vector<272x512xbf16>
    %cst = arith.constant dense<0.000000e+00> : vector<8x512xf32>
    %3 = tpu.matmul %1, %2, %cst {dimension_numbers = #tpu.dot_dimension_numbers<[1], [0], [0], [1], [0, 0, 1, 1], [], []>} : vector<8x272xbf16>, vector<272x512xbf16>, vector<8x512xf32> -> vector<8x512xf32>
    %c0_3 = arith.constant 0 : index
    %c0_4 = arith.constant 0 : index
    %4 = vector.load %arg3[%c0_3, %c0_4] : memref<1x512xf32, #tpu.memory_space<vmem>>, vector<1x512xf32>
    %5 = vector.broadcast %4 : vector<1x512xf32> to vector<8x512xf32>
    %6 = arith.addf %3, %5 : vector<8x512xf32>
    %cst_5 = arith.constant 0.000000e+00 : f32
    %7 = vector.broadcast %cst_5 : f32 to vector<8x512xf32>
    %8 = arith.maximumf %6, %7 : vector<8x512xf32>
    %9 = arith.truncf %8 : vector<8x512xf32> to vector<8x512xbf16>
    %c0_6 = arith.constant 0 : index
    %c0_7 = arith.constant 0 : index
    %10 = vector.load %arg4[%c0_6, %c0_7] : memref<512x512xbf16, #tpu.memory_space<vmem>>, vector<512x512xbf16>
    %cst_8 = arith.constant dense<0.000000e+00> : vector<8x512xf32>
    %11 = tpu.matmul %9, %10, %cst_8 {dimension_numbers = #tpu.dot_dimension_numbers<[1], [0], [0], [1], [0, 0, 1, 1], [], []>} : vector<8x512xbf16>, vector<512x512xbf16>, vector<8x512xf32> -> vector<8x512xf32>
    %c0_9 = arith.constant 0 : index
    %c0_10 = arith.constant 0 : index
    %12 = vector.load %arg5[%c0_9, %c0_10] : memref<1x512xf32, #tpu.memory_space<vmem>>, vector<1x512xf32>
    %13 = vector.broadcast %12 : vector<1x512xf32> to vector<8x512xf32>
    %14 = arith.addf %11, %13 : vector<8x512xf32>
    %cst_11 = arith.constant 0.000000e+00 : f32
    %15 = vector.broadcast %cst_11 : f32 to vector<8x512xf32>
    %16 = arith.maximumf %14, %15 : vector<8x512xf32>
    %17 = arith.truncf %16 : vector<8x512xf32> to vector<8x512xbf16>
    %c0_12 = arith.constant 0 : index
    %c0_13 = arith.constant 0 : index
    %18 = vector.load %arg6[%c0_12, %c0_13] : memref<512x512xbf16, #tpu.memory_space<vmem>>, vector<512x512xbf16>
    %cst_14 = arith.constant dense<0.000000e+00> : vector<8x512xf32>
    %19 = tpu.matmul %17, %18, %cst_14 {dimension_numbers = #tpu.dot_dimension_numbers<[1], [0], [0], [1], [0, 0, 1, 1], [], []>} : vector<8x512xbf16>, vector<512x512xbf16>, vector<8x512xf32> -> vector<8x512xf32>
    %c0_15 = arith.constant 0 : index
    %c0_16 = arith.constant 0 : index
    %20 = vector.load %arg7[%c0_15, %c0_16] : memref<1x512xf32, #tpu.memory_space<vmem>>, vector<1x512xf32>
    %21 = vector.broadcast %20 : vector<1x512xf32> to vector<8x512xf32>
    %22 = arith.addf %19, %21 : vector<8x512xf32>
    %cst_17 = arith.constant 0.000000e+00 : f32
    %23 = vector.broadcast %cst_17 : f32 to vector<8x512xf32>
    %24 = arith.maximumf %22, %23 : vector<8x512xf32>
    %25 = arith.truncf %24 : vector<8x512xf32> to vector<8x512xbf16>
    %c0_18 = arith.constant 0 : index
    %c0_19 = arith.constant 0 : index
    %26 = vector.load %arg8[%c0_18, %c0_19] : memref<512x1xbf16, #tpu.memory_space<vmem>>, vector<512x1xbf16>
    %cst_20 = arith.constant dense<0.000000e+00> : vector<8x1xf32>
    %27 = tpu.matmul %25, %26, %cst_20 {dimension_numbers = #tpu.dot_dimension_numbers<[1], [0], [0], [1], [0, 0, 1, 1], [], []>} : vector<8x512xbf16>, vector<512x1xbf16>, vector<8x1xf32> -> vector<8x1xf32>
    %c0_21 = arith.constant 0 : index
    %c0_22 = arith.constant 0 : index
    %28 = vector.load %arg9[%c0_21, %c0_22] : memref<1x1xf32, #tpu.memory_space<vmem>>, vector<1x1xf32>
    %29 = vector.broadcast %28 : vector<1x1xf32> to vector<8x1xf32>
    %30 = arith.addf %27, %29 : vector<8x1xf32>
    %c0_23 = arith.constant 0 : index
    %c0_24 = arith.constant 0 : index
    %31 = vector.load %arg10[%c0_23, %c0_24] : memref<8x1xf32, #tpu.memory_space<vmem>>, vector<8x1xf32>
    tpu.vector_store %arg10[%c0_23, %c0_24], %30 {strides = array<i32>} : memref<8x1xf32, #tpu.memory_space<vmem>>, vector<8x1xf32>,
    return
  }
  func.func @transform_0(%arg0: i32) -> (i32, i32) {
    %c0_i32 = arith.constant 0 : i32
    %c0_i32_0 = arith.constant 0 : i32
    return %arg0, %c0_i32 : i32, i32
  }
  func.func @transform_1(%arg0: i32) -> (i32, i32) {
    %c0_i32 = arith.constant 0 : i32
    %c0_i32_0 = arith.constant 0 : i32
    %c0_i32_1 = arith.constant 0 : i32
    return %c0_i32, %c0_i32_0 : i32, i32
  }
  func.func @transform_2(%arg0: i32) -> (i32, i32) {
    %c0_i32 = arith.constant 0 : i32
    %c0_i32_0 = arith.constant 0 : i32
    %c0_i32_1 = arith.constant 0 : i32
    return %c0_i32, %c0_i32_0 : i32, i32
  }
  func.func @transform_3(%arg0: i32) -> (i32, i32) {
    %c0_i32 = arith.constant 0 : i32
    %c0_i32_0 = arith.constant 0 : i32
    %c0_i32_1 = arith.constant 0 : i32
    return %c0_i32, %c0_i32_0 : i32, i32
  }
  func.func @transform_4(%arg0: i32) -> (i32, i32) {
    %c0_i32 = arith.constant 0 : i32
    %c0_i32_0 = arith.constant 0 : i32
    %c0_i32_1 = arith.constant 0 : i32
    return %c0_i32, %c0_i32_0 : i32, i32
  }
  func.func @transform_5(%arg0: i32) -> (i32, i32) {
    %c0_i32 = arith.constant 0 : i32
    %c0_i32_0 = arith.constant 0 : i32
    %c0_i32_1 = arith.constant 0 : i32
    return %c0_i32, %c0_i32_0 : i32, i32
  }
  func.func @transform_6(%arg0: i32) -> (i32, i32) {
    %c0_i32 = arith.constant 0 : i32
    %c0_i32_0 = arith.constant 0 : i32
    %c0_i32_1 = arith.constant 0 : i32
    return %c0_i32, %c0_i32_0 : i32, i32
  }
  func.func @transform_7(%arg0: i32) -> (i32, i32) {
    %c0_i32 = arith.constant 0 : i32
    %c0_i32_0 = arith.constant 0 : i32
    %c0_i32_1 = arith.constant 0 : i32
    return %c0_i32, %c0_i32_0 : i32, i32
  }
  func.func @transform_8(%arg0: i32) -> (i32, i32) {
    %c0_i32 = arith.constant 0 : i32
    %c0_i32_0 = arith.constant 0 : i32
    %c0_i32_1 = arith.constant 0 : i32
    return %c0_i32, %c0_i32_0 : i32, i32
  }
  func.func @transform_9(%arg0: i32) -> (i32, i32) {
    %c0_i32 = arith.constant 0 : i32
    %c0_i32_0 = arith.constant 0 : i32
    return %arg0, %c0_i32 : i32, i32
  }
}

</mosaic_0001>

<llo_original>
// kernel: forward.1
$region0: #{forward.1}
  #allocation0 [shape = 'u32[]', space=smem, size = 0x4, offset = 0x4, fixed_abs, tag = 'smem constant byte address 0x4 - core index']
  #allocation1 [shape = 'u32[72,128]{1,0:T(1,128)}', space=vmem, size = 0x9000, scoped, tag = 'internal scratch']
  #allocation2 [shape = 'f32[1,1]{1,0:T(1,128)S(1)}', space=vmem, size = 0x200, scoped, tag = 'scoped memory for forward.1']
  %s0 = inlined_call_operand.vmem [shape: f32[8,272], index: 0, kind: input, shape index: {}]
  %s1 = inlined_call_operand.hbm [shape: bf16[272,512], index: 1, kind: input, shape index: {}]
  %s2 = inlined_call_operand.vmem [shape: f32[1,512], index: 2, kind: input, shape index: {}]
  %s3 = inlined_call_operand.hbm [shape: bf16[512,512], index: 3, kind: input, shape index: {}]
  %s4 = inlined_call_operand.vmem [shape: f32[1,512], index: 4, kind: input, shape index: {}]
  %s5 = inlined_call_operand.hbm [shape: bf16[512,512], index: 5, kind: input, shape index: {}]
  %s6 = inlined_call_operand.vmem [shape: f32[1,512], index: 6, kind: input, shape index: {}]
  %s7 = inlined_call_operand.vmem [shape: bf16[512,1], index: 7, kind: input, shape index: {}]
  %s8 = inlined_call_operand.<no memory space> [shape: f32[1,1], index: 8, kind: input, shape index: {}]
  %s9 = inlined_call_operand.vmem [shape: f32[8,1], index: 9, kind: output, shape index: {}]
  %s10 = sld [smem:[#allocation0]]
  $region58: #{forward.1} parent=0
    _
  %s12 = ssub.s32 1, %s10
  %s13 = scalar_select 0, %s12, %s10
  %v14 = vstv %s8
  %15 = vst [vmem:[#allocation2] sm:$0x1] %v14
  $region1: #{forward.1} parent=0
    #allocation3 [shape = 'u8[278528]{0}', space=vmem, size = 0x44000, scoped, tag = 'input window, operand 1, single buffered']
    #allocation4 [shape = 's32[1]{0}', space=sflag, size = 0x4, scoped, tag = 'scoped memory for forward.1']
    #allocation5 [shape = 'u8[524288]{0}', space=vmem, size = 0x80000, scoped, tag = 'input window, operand 3, single buffered']
    #allocation6 [shape = 's32[1]{0}', space=sflag, size = 0x4, scoped, tag = 'scoped memory for forward.1']
    #allocation7 [shape = 'u8[524288]{0}', space=vmem, size = 0x80000, scoped, tag = 'input window, operand 5, single buffered']
    %16 = vsyncpa [#allocation4], 0
    %17 = vsyncpa [#allocation6], 0
    // Predicated region
    $region2: #{forward.1} parent=1 // pred_check
      _
    $region3: #{forward.1} parent=1 // pred_check_branch
      %19 = sbr.rel (0) target = $region5
    $region4: #{forward.1} parent=1 // pred_region
      _
    $region5: #{forward.1} parent=1 // pred_fallthru
      _
    // Predicated region
    $region6: #{forward.1} parent=1 // pred_check
      _
    $region7: #{forward.1} parent=1 // pred_check_branch
      %21 = sbr.rel (0) target = $region9
    $region8: #{forward.1} parent=1 // pred_region
      %23 = vsyncadd [#allocation4], 0
      %s24 = sshll.u32 %s1, 4
      %s25 = int_to_ptr.hbm [resolvable:$true] %s24
      %s26 = sshll.u32 [#allocation3], 4
      %s27 = int_to_ptr.vmem [resolvable:$true] %s26
      %32 = dma.hbm_to_vmem [thread:$0]  %s25, 8704, %s27, [#allocation4], 256, 256, 16
    $region9: #{forward.1} parent=1 // pred_fallthru
      _
    // Predicated region
    $region10: #{forward.1} parent=1 // pred_check
      _
    $region11: #{forward.1} parent=1 // pred_check_branch
      %34 = sbr.rel (0) target = $region13
    $region12: #{forward.1} parent=1 // pred_region
      _
    $region13: #{forward.1} parent=1 // pred_fallthru
      _
    // Predicated region
    $region14: #{forward.1} parent=1 // pred_check
      _
    $region15: #{forward.1} parent=1 // pred_check_branch
      %36 = sbr.rel (0) target = $region17
    $region16: #{forward.1} parent=1 // pred_region
      %38 = vsyncadd [#allocation6], 0
      %s39 = sshll.u32 %s3, 4
      %s40 = int_to_ptr.hbm [resolvable:$true] %s39
      %s41 = sshll.u32 [#allocation5], 4
      %s42 = int_to_ptr.vmem [resolvable:$true] %s41
      %47 = dma.hbm_to_vmem [thread:$0]  %s40, 16384, %s42, [#allocation6], 256, 256, 16
    $region17: #{forward.1} parent=1 // pred_fallthru
      _
    // Predicated region
    $region18: #{forward.1} parent=1 // pred_check
      _
    $region19: #{forward.1} parent=1 // pred_check_branch
      %49 = sbr.rel (0) target = $region21
    $region20: #{forward.1} parent=1 // pred_region
      _
    $region21: #{forward.1} parent=1 // pred_fallthru
      _
    // Predicated region
    $region22: #{forward.1} parent=1 // pred_check
      _
    $region23: #{forward.1} parent=1 // pred_check_branch
      %51 = sbr.rel (0) target = $region25
    $region24: #{forward.1} parent=1 // pred_region
      %53 = vsyncadd [#allocation6], 0
      %s54 = sshll.u32 %s5, 4
      %s55 = int_to_ptr.hbm [resolvable:$true] %s54
      %s56 = sshll.u32 [#allocation7], 4
      %s57 = int_to_ptr.vmem [resolvable:$true] %s56
      %62 = dma.hbm_to_vmem [thread:$0]  %s55, 16384, %s57, [#allocation6], 256, 256, 16
    $region25: #{forward.1} parent=1 // pred_fallthru
      _
    // Predicated region
    $region26: #{forward.1} parent=1 // pred_check
      _
    $region27: #{forward.1} parent=1 // pred_check_branch
      %64 = sbr.rel (0) target = $region29
    $region28: #{forward.1} parent=1 // pred_region
      _
    $region29: #{forward.1} parent=1 // pred_fallthru
      _
    // Predicated region
    $region30: #{forward.1} parent=1 // pred_check
      _
    $region31: #{forward.1} parent=1 // pred_check_branch
      %66 = sbr.rel (0) target = $region33
    $region32: #{forward.1} parent=1 // pred_region
      _
    $region33: #{forward.1} parent=1 // pred_fallthru
      _
    // Predicated region
    $region34: #{forward.1} parent=1 // pred_check
      _
    $region35: #{forward.1} parent=1 // pred_check_branch
      %68 = sbr.rel (0) target = $region37
    $region36: #{forward.1} parent=1 // pred_region
      _
    $region37: #{forward.1} parent=1 // pred_fallthru
      _
    // Predicated region
    $region38: #{forward.1} parent=1 // pred_check
      _
    $region39: #{forward.1} parent=1 // pred_check_branch
      %70 = sbr.rel (0) target = $region41
    $region40: #{forward.1} parent=1 // pred_region
      %72 = dma.done [#allocation4], 8704
    $region41: #{forward.1} parent=1 // pred_fallthru
      _
    // Predicated region
    $region42: #{forward.1} parent=1 // pred_check
      _
    $region43: #{forward.1} parent=1 // pred_check_branch
      %74 = sbr.rel (0) target = $region45
    $region44: #{forward.1} parent=1 // pred_region
      %76 = dma.done [#allocation6], 16384
    $region45: #{forward.1} parent=1 // pred_fallthru
      _
    // Predicated region
    $region46: #{forward.1} parent=1 // pred_check
      _
    $region47: #{forward.1} parent=1 // pred_check_branch
      %78 = sbr.rel (0) target = $region49
    $region48: #{forward.1} parent=1 // pred_region
      %80 = dma.done [#allocation6], 16384
    $region49: #{forward.1} parent=1 // pred_fallthru
      _
    %v82 = vld [vmem:[%s0] sm:$0xff]
    %v83 = vld [vmem:[%s0 + $0x8] sm:$0xff]
    %v84 = vld [vmem:[%s0 + $0x10] sm:$0xff]
    %v85 = vpack.c.bf16 %v82, %v82
    %v86 = vpack.c.bf16 %v83, %v83
    %v87 = vpack.c.bf16 %v84, %v84
    %v88 = vld [vmem:[#allocation3] sm:$0xff]
    %v89 = vld [vmem:[#allocation3 + $0x8] sm:$0xff]
    %v90 = vld [vmem:[#allocation3 + $0x10] sm:$0xff]
    %v91 = vld [vmem:[#allocation3 + $0x18] sm:$0xff]
    %v92 = vld [vmem:[#allocation3 + $0x20] sm:$0xff]
    %v93 = vld [vmem:[#allocation3 + $0x28] sm:$0xff]
    %v94 = vld [vmem:[#allocation3 + $0x30] sm:$0xff]
    %v95 = vld [vmem:[#allocation3 + $0x38] sm:$0xff]
    %v96 = vld [vmem:[#allocation3 + $0x40] sm:$0xff]
    %v97 = vld [vmem:[#allocation3 + $0x48] sm:$0xff]
    %v98 = vld [vmem:[#allocation3 + $0x50] sm:$0xff]
    %v99 = vld [vmem:[#allocation3 + $0x58] sm:$0xff]
    %v100 = vld [vmem:[#allocation3 + $0x60] sm:$0xff]
    %v101 = vld [vmem:[#allocation3 + $0x68] sm:$0xff]
    %v102 = vld [vmem:[#allocation3 + $0x70] sm:$0xff]
    %v103 = vld [vmem:[#allocation3 + $0x78] sm:$0xff]
    %v104 = vld [vmem:[#allocation3 + $0x80] sm:$0xff]
    %v105 = vld [vmem:[#allocation3 + $0x88] sm:$0xff]
    %v106 = vld [vmem:[#allocation3 + $0x90] sm:$0xff]
    %v107 = vld [vmem:[#allocation3 + $0x98] sm:$0xff]
    %v108 = vld [vmem:[#allocation3 + $0xa0] sm:$0xff]
    %v109 = vld [vmem:[#allocation3 + $0xa8] sm:$0xff]
    %v110 = vld [vmem:[#allocation3 + $0xb0] sm:$0xff]
    %v111 = vld [vmem:[#allocation3 + $0xb8] sm:$0xff]
    %v112 = vld [vmem:[#allocation3 + $0xc0] sm:$0xff]
    %v113 = vld [vmem:[#allocation3 + $0xc8] sm:$0xff]
    %v114 = vld [vmem:[#allocation3 + $0xd0] sm:$0xff]
    %v115 = vld [vmem:[#allocation3 + $0xd8] sm:$0xff]
    %v116 = vld [vmem:[#allocation3 + $0xe0] sm:$0xff]
    %v117 = vld [vmem:[#allocation3 + $0xe8] sm:$0xff]
    %v118 = vld [vmem:[#allocation3 + $0xf0] sm:$0xff]
    %v119 = vld [vmem:[#allocation3 + $0xf8] sm:$0xff]
    %v120 = vld [vmem:[#allocation3 + $0x100] sm:$0xff]
    %v121 = vld [vmem:[#allocation3 + $0x108] sm:$0xff]
    %v122 = vld [vmem:[#allocation3 + $0x110] sm:$0xff]
    %v123 = vld [vmem:[#allocation3 + $0x118] sm:$0xff]
    %v124 = vld [vmem:[#allocation3 + $0x120] sm:$0xff]
    %v125 = vld [vmem:[#allocation3 + $0x128] sm:$0xff]
    %v126 = vld [vmem:[#allocation3 + $0x130] sm:$0xff]
    %v127 = vld [vmem:[#allocation3 + $0x138] sm:$0xff]
    %v128 = vld [vmem:[#allocation3 + $0x140] sm:$0xff]
    %v129 = vld [vmem:[#allocation3 + $0x148] sm:$0xff]
    %v130 = vld [vmem:[#allocation3 + $0x150] sm:$0xff]
    %v131 = vld [vmem:[#allocation3 + $0x158] sm:$0xff]
    %v132 = vld [vmem:[#allocation3 + $0x160] sm:$0xff]
    %v133 = vld [vmem:[#allocation3 + $0x168] sm:$0xff]
    %v134 = vld [vmem:[#allocation3 + $0x170] sm:$0xff]
    %v135 = vld [vmem:[#allocation3 + $0x178] sm:$0xff]
    %v136 = vld [vmem:[#allocation3 + $0x180] sm:$0xff]
    %v137 = vld [vmem:[#allocation3 + $0x188] sm:$0xff]
    %v138 = vld [vmem:[#allocation3 + $0x190] sm:$0xff]
    %v139 = vld [vmem:[#allocation3 + $0x198] sm:$0xff]
    %v140 = vld [vmem:[#allocation3 + $0x1a0] sm:$0xff]
    %v141 = vld [vmem:[#allocation3 + $0x1a8] sm:$0xff]
    %v142 = vld [vmem:[#allocation3 + $0x1b0] sm:$0xff]
    %v143 = vld [vmem:[#allocation3 + $0x1b8] sm:$0xff]
    %v144 = vld [vmem:[#allocation3 + $0x1c0] sm:$0xff]
    %v145 = vld [vmem:[#allocation3 + $0x1c8] sm:$0xff]
    %v146 = vld [vmem:[#allocation3 + $0x1d0] sm:$0xff]
    %v147 = vld [vmem:[#allocation3 + $0x1d8] sm:$0xff]
    %v148 = vld [vmem:[#allocation3 + $0x1e0] sm:$0xff]
    %v149 = vld [vmem:[#allocation3 + $0x1e8] sm:$0xff]
    %v150 = vld [vmem:[#allocation3 + $0x1f0] sm:$0xff]
    %v151 = vld [vmem:[#allocation3 + $0x1f8] sm:$0xff]
    %v152 = vld [vmem:[#allocation3 + $0x200] sm:$0xff]
    %v153 = vld [vmem:[#allocation3 + $0x208] sm:$0xff]
    %v154 = vld [vmem:[#allocation3 + $0x210] sm:$0xff]
    %v155 = vld [vmem:[#allocation3 + $0x218] sm:$0xff]
    %v156 = vld [vmem:[%s2] sm:$0xf]
    %v158 = vperm.slane %v156, 0
    %v159 = vperm.slane %v156, 1
    %v160 = vperm.slane %v156, 2
    %v161 = vperm.slane %v156, 3
    %v234 = vunpack.c.l.b16 %v88
    %v235 = vunpack.c.h.b16 %v88
    %v236 = vunpack.c.l.b16 %v89
    %v237 = vunpack.c.h.b16 %v89
    %v238 = vunpack.c.l.b16 %v90
    %v239 = vunpack.c.h.b16 %v90
    %v240 = vunpack.c.l.b16 %v91
    %v241 = vunpack.c.h.b16 %v91
    %v242 = vunpack.c.l.b16 %v92
    %v243 = vunpack.c.h.b16 %v92
    %v244 = vunpack.c.l.b16 %v93
    %v245 = vunpack.c.h.b16 %v93
    %v246 = vunpack.c.l.b16 %v94
    %v247 = vunpack.c.h.b16 %v94
    %v248 = vunpack.c.l.b16 %v95
    %v249 = vunpack.c.h.b16 %v95
    %v250 = vunpack.c.l.b16 %v96
    %v251 = vunpack.c.h.b16 %v96
    %v252 = vunpack.c.l.b16 %v97
    %v253 = vunpack.c.h.b16 %v97
    %v254 = vunpack.c.l.b16 %v98
    %v255 = vunpack.c.h.b16 %v98
    %v256 = vunpack.c.l.b16 %v99
    %v257 = vunpack.c.h.b16 %v99
    %v258 = vunpack.c.l.b16 %v100
    %v259 = vunpack.c.h.b16 %v100
    %v260 = vunpack.c.l.b16 %v101
    %v261 = vunpack.c.h.b16 %v101
    %v262 = vunpack.c.l.b16 %v102
    %v263 = vunpack.c.h.b16 %v102
    %v264 = vunpack.c.l.b16 %v103
    %v265 = vunpack.c.h.b16 %v103
    %v266 = vunpack.c.l.b16 %v104
    %v267 = vunpack.c.h.b16 %v104
    %v268 = vunpack.c.l.b16 %v105
    %v269 = vunpack.c.h.b16 %v105
    %v270 = vunpack.c.l.b16 %v106
    %v271 = vunpack.c.h.b16 %v106
    %v272 = vunpack.c.l.b16 %v107
    %v273 = vunpack.c.h.b16 %v107
    %v274 = vunpack.c.l.b16 %v108
    %v275 = vunpack.c.h.b16 %v108
    %v276 = vunpack.c.l.b16 %v109
    %v277 = vunpack.c.h.b16 %v109
    %v278 = vunpack.c.l.b16 %v110
    %v279 = vunpack.c.h.b16 %v110
    %v280 = vunpack.c.l.b16 %v111
    %v281 = vunpack.c.h.b16 %v111
    %v282 = vunpack.c.l.b16 %v112
    %v283 = vunpack.c.h.b16 %v112
    %v284 = vunpack.c.l.b16 %v113
    %v285 = vunpack.c.h.b16 %v113
    %v286 = vunpack.c.l.b16 %v114
    %v287 = vunpack.c.h.b16 %v114
    %v288 = vunpack.c.l.b16 %v115
    %v289 = vunpack.c.h.b16 %v115
    %v290 = vunpack.c.l.b16 %v116
    %v291 = vunpack.c.h.b16 %v116
    %v292 = vunpack.c.l.b16 %v117
    %v293 = vunpack.c.h.b16 %v117
    %v294 = vunpack.c.l.b16 %v118
    %v295 = vunpack.c.h.b16 %v118
    %v296 = vunpack.c.l.b16 %v119
    %v297 = vunpack.c.h.b16 %v119
    %v298 = vunpack.c.l.b16 %v120
    %v299 = vunpack.c.h.b16 %v120
    %v300 = vunpack.c.l.b16 %v121
    %v301 = vunpack.c.h.b16 %v121
    %v302 = vunpack.c.l.b16 %v122
    %v303 = vunpack.c.h.b16 %v122
    %v304 = vunpack.c.l.b16 %v123
    %v305 = vunpack.c.h.b16 %v123
    %v306 = vunpack.c.l.b16 %v124
    %v307 = vunpack.c.h.b16 %v124
    %v308 = vunpack.c.l.b16 %v125
    %v309 = vunpack.c.h.b16 %v125
    %v310 = vunpack.c.l.b16 %v126
    %v311 = vunpack.c.h.b16 %v126
    %v312 = vunpack.c.l.b16 %v127
    %v313 = vunpack.c.h.b16 %v127
    %v314 = vunpack.c.l.b16 %v128
    %v315 = vunpack.c.h.b16 %v128
    %v316 = vunpack.c.l.b16 %v129
    %v317 = vunpack.c.h.b16 %v129
    %v318 = vunpack.c.l.b16 %v130
    %v319 = vunpack.c.h.b16 %v130
    %v320 = vunpack.c.l.b16 %v131
    %v321 = vunpack.c.h.b16 %v131
    %v322 = vunpack.c.l.b16 %v132
    %v323 = vunpack.c.h.b16 %v132
    %v324 = vunpack.c.l.b16 %v133
    %v325 = vunpack.c.h.b16 %v133
    %v326 = vunpack.c.l.b16 %v134
    %v327 = vunpack.c.h.b16 %v134
    %v328 = vunpack.c.l.b16 %v135
    %v329 = vunpack.c.h.b16 %v135
    %v330 = vunpack.c.l.b16 %v136
    %v331 = vunpack.c.h.b16 %v136
    %v332 = vunpack.c.l.b16 %v137
    %v333 = vunpack.c.h.b16 %v137
    %v334 = vunpack.c.l.b16 %v138
    %v335 = vunpack.c.h.b16 %v138
    %v336 = vunpack.c.l.b16 %v139
    %v337 = vunpack.c.h.b16 %v139
    %v338 = vunpack.c.l.b16 %v140
    %v339 = vunpack.c.h.b16 %v140
    %v340 = vunpack.c.l.b16 %v141
    %v341 = vunpack.c.h.b16 %v141
    %v342 = vunpack.c.l.b16 %v142
    %v343 = vunpack.c.h.b16 %v142
    %v344 = vunpack.c.l.b16 %v143
    %v345 = vunpack.c.h.b16 %v143
    %v346 = vunpack.c.l.b16 %v144
    %v347 = vunpack.c.h.b16 %v144
    %v348 = vunpack.c.l.b16 %v145
    %v349 = vunpack.c.h.b16 %v145
    %v350 = vunpack.c.l.b16 %v146
    %v351 = vunpack.c.h.b16 %v146
    %v352 = vunpack.c.l.b16 %v147
    %v353 = vunpack.c.h.b16 %v147
    %v354 = vunpack.c.l.b16 %v148
    %v355 = vunpack.c.h.b16 %v148
    %v356 = vunpack.c.l.b16 %v149
    %v357 = vunpack.c.h.b16 %v149
    %v358 = vunpack.c.l.b16 %v150
    %v359 = vunpack.c.h.b16 %v150
    %v360 = vunpack.c.l.b16 %v151
    %v361 = vunpack.c.h.b16 %v151
    %v362 = vunpack.c.l.b16 %v152
    %v363 = vunpack.c.h.b16 %v152
    %v364 = vunpack.c.l.b16 %v153
    %v365 = vunpack.c.h.b16 %v153
    %v366 = vunpack.c.l.b16 %v154
    %v367 = vunpack.c.h.b16 %v154
    %v368 = vunpack.c.l.b16 %v155
    %v369 = vunpack.c.h.b16 %v155
    %v370 = vpack.c.b16 %v238, %v234
    %v371 = vpack.c.b16 %v239, %v235
    %v372 = vpack.c.b16 %v240, %v236
    %v373 = vpack.c.b16 %v241, %v237
    %v374 = vpack.c.b16 %v246, %v242
    %v375 = vpack.c.b16 %v247, %v243
    %v376 = vpack.c.b16 %v248, %v244
    %v377 = vpack.c.b16 %v249, %v245
    %v378 = vpack.c.b16 %v254, %v250
    %v379 = vpack.c.b16 %v255, %v251
    %v380 = vpack.c.b16 %v256, %v252
    %v381 = vpack.c.b16 %v257, %v253
    %v382 = vpack.c.b16 %v262, %v258
    %v383 = vpack.c.b16 %v263, %v259
    %v384 = vpack.c.b16 %v264, %v260
    %v385 = vpack.c.b16 %v265, %v261
    %v386 = vpack.c.b16 %v270, %v266
    %v387 = vpack.c.b16 %v271, %v267
    %v388 = vpack.c.b16 %v272, %v268
    %v389 = vpack.c.b16 %v273, %v269
    %v390 = vpack.c.b16 %v278, %v274
    %v391 = vpack.c.b16 %v279, %v275
    %v392 = vpack.c.b16 %v280, %v276
    %v393 = vpack.c.b16 %v281, %v277
    %v394 = vpack.c.b16 %v286, %v282
    %v395 = vpack.c.b16 %v287, %v283
    %v396 = vpack.c.b16 %v288, %v284
    %v397 = vpack.c.b16 %v289, %v285
    %v398 = vpack.c.b16 %v294, %v290
    %v399 = vpack.c.b16 %v295, %v291
    %v400 = vpack.c.b16 %v296, %v292
    %v401 = vpack.c.b16 %v297, %v293
    %v402 = vpack.c.b16 %v302, %v298
    %v403 = vpack.c.b16 %v303, %v299
    %v404 = vpack.c.b16 %v304, %v300
    %v405 = vpack.c.b16 %v305, %v301
    %v406 = vpack.c.b16 %v310, %v306
    %v407 = vpack.c.b16 %v311, %v307
    %v408 = vpack.c.b16 %v312, %v308
    %v409 = vpack.c.b16 %v313, %v309
    %v410 = vpack.c.b16 %v318, %v314
    %v411 = vpack.c.b16 %v319, %v315
    %v412 = vpack.c.b16 %v320, %v316
    %v413 = vpack.c.b16 %v321, %v317
    %v414 = vpack.c.b16 %v326, %v322
    %v415 = vpack.c.b16 %v327, %v323
    %v416 = vpack.c.b16 %v328, %v324
    %v417 = vpack.c.b16 %v329, %v325
    %v418 = vpack.c.b16 %v334, %v330
    %v419 = vpack.c.b16 %v335, %v331
    %v420 = vpack.c.b16 %v336, %v332
    %v421 = vpack.c.b16 %v337, %v333
    %v422 = vpack.c.b16 %v342, %v338
    %v423 = vpack.c.b16 %v343, %v339
    %v424 = vpack.c.b16 %v344, %v340
    %v425 = vpack.c.b16 %v345, %v341
    %v426 = vpack.c.b16 %v350, %v346
    %v427 = vpack.c.b16 %v351, %v347
    %v428 = vpack.c.b16 %v352, %v348
    %v429 = vpack.c.b16 %v353, %v349
    %v430 = vpack.c.b16 %v358, %v354
    %v431 = vpack.c.b16 %v359, %v355
    %v432 = vpack.c.b16 %v360, %v356
    %v433 = vpack.c.b16 %v361, %v357
    %v434 = vpack.c.b16 %v366, %v362
    %v435 = vpack.c.b16 %v367, %v363
    %v436 = vpack.c.b16 %v368, %v364
    %v437 = vpack.c.b16 %v369, %v365
    %vm506 = vcmask 130048
    %v508 = vsel %vm506, %v87, 0
    %510 = vmatpush.bf16.msra.mxu0 %v398
    %511 = vmatpush.bf16.msra.mxu0 %v394
    %512 = vmatpush.bf16.msra.mxu0 %v390
    %513 = vmatpush.bf16.msra.mxu0 %v386
    %514 = vmatpush.bf16.msra.mxu0 %v382
    %515 = vmatpush.bf16.msra.mxu0 %v378
    %516 = vmatpush.bf16.msra.mxu0 %v374
    %517 = vmatpush.bf16.msra.mxu0 %v370
    %518 = vmatmul.bf16.gmra.mxu0 %v85
    %v519 = vpop.f32.mrf.mxu0
    %v520 = vadd.f32 %v158, %v519
    %v521 = vpop.f32.mrf.mxu0
    %522 = vdwg.mxu0
    %523 = vmatpush.bf16.msra.mxu0 %v430
    %524 = vmatpush.bf16.msra.mxu0 %v426
    %525 = vmatpush.bf16.msra.mxu0 %v422
    %526 = vmatpush.bf16.msra.mxu0 %v418
    %527 = vmatpush.bf16.msra.mxu0 %v414
    %528 = vmatpush.bf16.msra.mxu0 %v410
    %529 = vmatpush.bf16.msra.mxu0 %v406
    %530 = vmatpush.bf16.msra.mxu0 %v402
    %531 = vmatmul.bf16.gmra.mxu0 %v86
    %v532 = vpop.f32.mrf.mxu0
    %v533 = vadd.f32 %v520, %v532
    %v534 = vpop.f32.mrf.mxu0
    %535 = vdwg.mxu0
    %536 = vmatpush.bf16.msra.mxu0 0
    %537 = vmatpush.bf16.msra.mxu0 0
    %538 = vmatpush.bf16.msra.mxu0 0
    %539 = vmatpush.bf16.msra.mxu0 0
    %540 = vmatpush.bf16.msra.mxu0 0
    %541 = vmatpush.bf16.msra.mxu0 0
    %542 = vmatpush.bf16.msra.mxu0 0
    %543 = vmatpush.bf16.msra.mxu0 %v434
    %544 = vmatmul.bf16.gmra.mxu0 %v508
    %v545 = vpop.f32.mrf.mxu0
    %v546 = vadd.f32 %v533, %v545
    %v547 = vpop.f32.mrf.mxu0
    %548 = vdwg.mxu0
    %549 = vmatpush.bf16.msra.mxu0 %v399
    %550 = vmatpush.bf16.msra.mxu0 %v395
    %551 = vmatpush.bf16.msra.mxu0 %v391
    %552 = vmatpush.bf16.msra.mxu0 %v387
    %553 = vmatpush.bf16.msra.mxu0 %v383
    %554 = vmatpush.bf16.msra.mxu0 %v379
    %555 = vmatpush.bf16.msra.mxu0 %v375
    %556 = vmatpush.bf16.msra.mxu0 %v371
    %557 = vmatmul.bf16.gmra.mxu0 %v85
    %v558 = vpop.f32.mrf.mxu0
    %v559 = vadd.f32 %v159, %v558
    %v560 = vpop.f32.mrf.mxu0
    %561 = vdwg.mxu0
    %562 = vmatpush.bf16.msra.mxu0 %v431
    %563 = vmatpush.bf16.msra.mxu0 %v427
    %564 = vmatpush.bf16.msra.mxu0 %v423
    %565 = vmatpush.bf16.msra.mxu0 %v419
    %566 = vmatpush.bf16.msra.mxu0 %v415
    %567 = vmatpush.bf16.msra.mxu0 %v411
    %568 = vmatpush.bf16.msra.mxu0 %v407
    %569 = vmatpush.bf16.msra.mxu0 %v403
    %570 = vmatmul.bf16.gmra.mxu0 %v86
    %v571 = vpop.f32.mrf.mxu0
    %v572 = vadd.f32 %v559, %v571
    %v573 = vpop.f32.mrf.mxu0
    %574 = vdwg.mxu0
    %575 = vmatpush.bf16.msra.mxu0 0
    %576 = vmatpush.bf16.msra.mxu0 0
    %577 = vmatpush.bf16.msra.mxu0 0
    %578 = vmatpush.bf16.msra.mxu0 0
    %579 = vmatpush.bf16.msra.mxu0 0
    %580 = vmatpush.bf16.msra.mxu0 0
    %581 = vmatpush.bf16.msra.mxu0 0
    %582 = vmatpush.bf16.msra.mxu0 %v435
    %583 = vmatmul.bf16.gmra.mxu0 %v508
    %v584 = vpop.f32.mrf.mxu0
    %v585 = vadd.f32 %v572, %v584
    %v586 = vpop.f32.mrf.mxu0
    %587 = vdwg.mxu0
    %588 = vmatpush.bf16.msra.mxu0 %v400
    %589 = vmatpush.bf16.msra.mxu0 %v396
    %590 = vmatpush.bf16.msra.mxu0 %v392
    %591 = vmatpush.bf16.msra.mxu0 %v388
    %592 = vmatpush.bf16.msra.mxu0 %v384
    %593 = vmatpush.bf16.msra.mxu0 %v380
    %594 = vmatpush.bf16.msra.mxu0 %v376
    %595 = vmatpush.bf16.msra.mxu0 %v372
    %596 = vmatmul.bf16.gmra.mxu0 %v85
    %v597 = vpop.f32.mrf.mxu0
    %v598 = vadd.f32 %v160, %v597
    %v599 = vpop.f32.mrf.mxu0
    %600 = vdwg.mxu0
    %601 = vmatpush.bf16.msra.mxu0 %v432
    %602 = vmatpush.bf16.msra.mxu0 %v428
    %603 = vmatpush.bf16.msra.mxu0 %v424
    %604 = vmatpush.bf16.msra.mxu0 %v420
    %605 = vmatpush.bf16.msra.mxu0 %v416
    %606 = vmatpush.bf16.msra.mxu0 %v412
    %607 = vmatpush.bf16.msra.mxu0 %v408
    %608 = vmatpush.bf16.msra.mxu0 %v404
    %609 = vmatmul.bf16.gmra.mxu0 %v86
    %v610 = vpop.f32.mrf.mxu0
    %v611 = vadd.f32 %v598, %v610
    %v612 = vpop.f32.mrf.mxu0
    %613 = vdwg.mxu0
    %614 = vmatpush.bf16.msra.mxu0 0
    %615 = vmatpush.bf16.msra.mxu0 0
    %616 = vmatpush.bf16.msra.mxu0 0
    %617 = vmatpush.bf16.msra.mxu0 0
    %618 = vmatpush.bf16.msra.mxu0 0
    %619 = vmatpush.bf16.msra.mxu0 0
    %620 = vmatpush.bf16.msra.mxu0 0
    %621 = vmatpush.bf16.msra.mxu0 %v436
    %622 = vmatmul.bf16.gmra.mxu0 %v508
    %v623 = vpop.f32.mrf.mxu0
    %v624 = vadd.f32 %v611, %v623
    %v625 = vpop.f32.mrf.mxu0
    %626 = vdwg.mxu0
    %627 = vmatpush.bf16.msra.mxu0 %v401
    %628 = vmatpush.bf16.msra.mxu0 %v397
    %629 = vmatpush.bf16.msra.mxu0 %v393
    %630 = vmatpush.bf16.msra.mxu0 %v389
    %631 = vmatpush.bf16.msra.mxu0 %v385
    %632 = vmatpush.bf16.msra.mxu0 %v381
    %633 = vmatpush.bf16.msra.mxu0 %v377
    %634 = vmatpush.bf16.msra.mxu0 %v373
    %635 = vmatmul.bf16.gmra.mxu0 %v85
    %v636 = vpop.f32.mrf.mxu0
    %v637 = vadd.f32 %v161, %v636
    %v638 = vpop.f32.mrf.mxu0
    %639 = vdwg.mxu0
    %640 = vmatpush.bf16.msra.mxu0 %v433
    %641 = vmatpush.bf16.msra.mxu0 %v429
    %642 = vmatpush.bf16.msra.mxu0 %v425
    %643 = vmatpush.bf16.msra.mxu0 %v421
    %644 = vmatpush.bf16.msra.mxu0 %v417
    %645 = vmatpush.bf16.msra.mxu0 %v413
    %646 = vmatpush.bf16.msra.mxu0 %v409
    %647 = vmatpush.bf16.msra.mxu0 %v405
    %648 = vmatmul.bf16.gmra.mxu0 %v86
    %v649 = vpop.f32.mrf.mxu0
    %v650 = vadd.f32 %v637, %v649
    %v651 = vpop.f32.mrf.mxu0
    %652 = vdwg.mxu0
    %653 = vmatpush.bf16.msra.mxu0 0
    %654 = vmatpush.bf16.msra.mxu0 0
    %655 = vmatpush.bf16.msra.mxu0 0
    %656 = vmatpush.bf16.msra.mxu0 0
    %657 = vmatpush.bf16.msra.mxu0 0
    %658 = vmatpush.bf16.msra.mxu0 0
    %659 = vmatpush.bf16.msra.mxu0 0
    %660 = vmatpush.bf16.msra.mxu0 %v437
    %661 = vmatmul.bf16.gmra.mxu0 %v508
    %v662 = vpop.f32.mrf.mxu0
    %v663 = vadd.f32 %v650, %v662
    %v664 = vpop.f32.mrf.mxu0
    %665 = vdwg.mxu0
    %v666 = vmax.f32 %v546, 0.0
    %v667 = vmax.f32 %v585, 0.0
    %v668 = vmax.f32 %v624, 0.0
    %v669 = vmax.f32 %v663, 0.0
    %v670 = vpack.c.bf16 %v666, %v666
    %v671 = vpack.c.bf16 %v667, %v667
    %v672 = vpack.c.bf16 %v668, %v668
    %v673 = vpack.c.bf16 %v669, %v669
    %v674 = vld [vmem:[#allocation5] sm:$0xff]
    %v675 = vld [vmem:[#allocation5 + $0x8] sm:$0xff]
    %v676 = vld [vmem:[#allocation5 + $0x10] sm:$0xff]
    %v677 = vld [vmem:[#allocation5 + $0x18] sm:$0xff]
    %v678 = vld [vmem:[#allocation5 + $0x20] sm:$0xff]
    %v679 = vld [vmem:[#allocation5 + $0x28] sm:$0xff]
    %v680 = vld [vmem:[#allocation5 + $0x30] sm:$0xff]
    %v681 = vld [vmem:[#allocation5 + $0x38] sm:$0xff]
    %v682 = vld [vmem:[#allocation5 + $0x40] sm:$0xff]
    %v683 = vld [vmem:[#allocation5 + $0x48] sm:$0xff]
    %v684 = vld [vmem:[#allocation5 + $0x50] sm:$0xff]
    %v685 = vld [vmem:[#allocation5 + $0x58] sm:$0xff]
    %v686 = vld [vmem:[#allocation5 + $0x60] sm:$0xff]
    %v687 = vld [vmem:[#allocation5 + $0x68] sm:$0xff]
    %v688 = vld [vmem:[#allocation5 + $0x70] sm:$0xff]
    %v689 = vld [vmem:[#allocation5 + $0x78] sm:$0xff]
    %v690 = vld [vmem:[#allocation5 + $0x80] sm:$0xff]
    %v691 = vld [vmem:[#allocation5 + $0x88] sm:$0xff]
    %v692 = vld [vmem:[#allocation5 + $0x90] sm:$0xff]
    %v693 = vld [vmem:[#allocation5 + $0x98] sm:$0xff]
    %v694 = vld [vmem:[#allocation5 + $0xa0] sm:$0xff]
    %v695 = vld [vmem:[#allocation5 + $0xa8] sm:$0xff]
    %v696 = vld [vmem:[#allocation5 + $0xb0] sm:$0xff]
    %v697 = vld [vmem:[#allocation5 + $0xb8] sm:$0xff]
    %v698 = vld [vmem:[#allocation5 + $0xc0] sm:$0xff]
    %v699 = vld [vmem:[#allocation5 + $0xc8] sm:$0xff]
    %v700 = vld [vmem:[#allocation5 + $0xd0] sm:$0xff]
    %v701 = vld [vmem:[#allocation5 + $0xd8] sm:$0xff]
    %v702 = vld [vmem:[#allocation5 + $0xe0] sm:$0xff]
    %v703 = vld [vmem:[#allocation5 + $0xe8] sm:$0xff]
    %v704 = vld [vmem:[#allocation5 + $0xf0] sm:$0xff]
    %v705 = vld [vmem:[#allocation5 + $0xf8] sm:$0xff]
    %v706 = vld [vmem:[#allocation5 + $0x100] sm:$0xff]
    %v707 = vld [vmem:[#allocation5 + $0x108] sm:$0xff]
    %v708 = vld [vmem:[#allocation5 + $0x110] sm:$0xff]
    %v709 = vld [vmem:[#allocation5 + $0x118] sm:$0xff]
    %v710 = vld [vmem:[#allocation5 + $0x120] sm:$0xff]
    %v711 = vld [vmem:[#allocation5 + $0x128] sm:$0xff]
    %v712 = vld [vmem:[#allocation5 + $0x130] sm:$0xff]
    %v713 = vld [vmem:[#allocation5 + $0x138] sm:$0xff]
    %v714 = vld [vmem:[#allocation5 + $0x140] sm:$0xff]
    %v715 = vld [vmem:[#allocation5 + $0x148] sm:$0xff]
    %v716 = vld [vmem:[#allocation5 + $0x150] sm:$0xff]
    %v717 = vld [vmem:[#allocation5 + $0x158] sm:$0xff]
    %v718 = vld [vmem:[#allocation5 + $0x160] sm:$0xff]
    %v719 = vld [vmem:[#allocation5 + $0x168] sm:$0xff]
    %v720 = vld [vmem:[#allocation5 + $0x170] sm:$0xff]
    %v721 = vld [vmem:[#allocation5 + $0x178] sm:$0xff]
    %v722 = vld [vmem:[#allocation5 + $0x180] sm:$0xff]
    %v723 = vld [vmem:[#allocation5 + $0x188] sm:$0xff]
    %v724 = vld [vmem:[#allocation5 + $0x190] sm:$0xff]
    %v725 = vld [vmem:[#allocation5 + $0x198] sm:$0xff]
    %v726 = vld [vmem:[#allocation5 + $0x1a0] sm:$0xff]
    %v727 = vld [vmem:[#allocation5 + $0x1a8] sm:$0xff]
    %v728 = vld [vmem:[#allocation5 + $0x1b0] sm:$0xff]
    %v729 = vld [vmem:[#allocation5 + $0x1b8] sm:$0xff]
    %v730 = vld [vmem:[#allocation5 + $0x1c0] sm:$0xff]
    %v731 = vld [vmem:[#allocation5 + $0x1c8] sm:$0xff]
    %v732 = vld [vmem:[#allocation5 + $0x1d0] sm:$0xff]
    %v733 = vld [vmem:[#allocation5 + $0x1d8] sm:$0xff]
    %v734 = vld [vmem:[#allocation5 + $0x1e0] sm:$0xff]
    %v735 = vld [vmem:[#allocation5 + $0x1e8] sm:$0xff]
    %v736 = vld [vmem:[#allocation5 + $0x1f0] sm:$0xff]
    %v737 = vld [vmem:[#allocation5 + $0x1f8] sm:$0xff]
    %v738 = vld [vmem:[#allocation5 + $0x200] sm:$0xff]
    %v739 = vld [vmem:[#allocation5 + $0x208] sm:$0xff]
    %v740 = vld [vmem:[#allocation5 + $0x210] sm:$0xff]
    %v741 = vld [vmem:[#allocation5 + $0x218] sm:$0xff]
    %v742 = vld [vmem:[#allocation5 + $0x220] sm:$0xff]
    %v743 = vld [vmem:[#allocation5 + $0x228] sm:$0xff]
    %v744 = vld [vmem:[#allocation5 + $0x230] sm:$0xff]
    %v745 = vld [vmem:[#allocation5 + $0x238] sm:$0xff]
    %v746 = vld [vmem:[#allocation5 + $0x240] sm:$0xff]
    %v747 = vld [vmem:[#allocation5 + $0x248] sm:$0xff]
    %v748 = vld [vmem:[#allocation5 + $0x250] sm:$0xff]
    %v749 = vld [vmem:[#allocation5 + $0x258] sm:$0xff]
    %v750 = vld [vmem:[#allocation5 + $0x260] sm:$0xff]
    %v751 = vld [vmem:[#allocation5 + $0x268] sm:$0xff]
    %v752 = vld [vmem:[#allocation5 + $0x270] sm:$0xff]
    %v753 = vld [vmem:[#allocation5 + $0x278] sm:$0xff]
    %v754 = vld [vmem:[#allocation5 + $0x280] sm:$0xff]
    %v755 = vld [vmem:[#allocation5 + $0x288] sm:$0xff]
    %v756 = vld [vmem:[#allocation5 + $0x290] sm:$0xff]
    %v757 = vld [vmem:[#allocation5 + $0x298] sm:$0xff]
    %v758 = vld [vmem:[#allocation5 + $0x2a0] sm:$0xff]
    %v759 = vld [vmem:[#allocation5 + $0x2a8] sm:$0xff]
    %v760 = vld [vmem:[#allocation5 + $0x2b0] sm:$0xff]
    %v761 = vld [vmem:[#allocation5 + $0x2b8] sm:$0xff]
    %v762 = vld [vmem:[#allocation5 + $0x2c0] sm:$0xff]
    %v763 = vld [vmem:[#allocation5 + $0x2c8] sm:$0xff]
    %v764 = vld [vmem:[#allocation5 + $0x2d0] sm:$0xff]
    %v765 = vld [vmem:[#allocation5 + $0x2d8] sm:$0xff]
    %v766 = vld [vmem:[#allocation5 + $0x2e0] sm:$0xff]
    %v767 = vld [vmem:[#allocation5 + $0x2e8] sm:$0xff]
    %v768 = vld [vmem:[#allocation5 + $0x2f0] sm:$0xff]
    %v769 = vld [vmem:[#allocation5 + $0x2f8] sm:$0xff]
    %v770 = vld [vmem:[#allocation5 + $0x300] sm:$0xff]
    %v771 = vld [vmem:[#allocation5 + $0x308] sm:$0xff]
    %v772 = vld [vmem:[#allocation5 + $0x310] sm:$0xff]
    %v773 = vld [vmem:[#allocation5 + $0x318] sm:$0xff]
    %v774 = vld [vmem:[#allocation5 + $0x320] sm:$0xff]
    %v775 = vld [vmem:[#allocation5 + $0x328] sm:$0xff]
    %v776 = vld [vmem:[#allocation5 + $0x330] sm:$0xff]
    %v777 = vld [vmem:[#allocation5 + $0x338] sm:$0xff]
    %v778 = vld [vmem:[#allocation5 + $0x340] sm:$0xff]
    %v779 = vld [vmem:[#allocation5 + $0x348] sm:$0xff]
    %v780 = vld [vmem:[#allocation5 + $0x350] sm:$0xff]
    %v781 = vld [vmem:[#allocation5 + $0x358] sm:$0xff]
    %v782 = vld [vmem:[#allocation5 + $0x360] sm:$0xff]
    %v783 = vld [vmem:[#allocation5 + $0x368] sm:$0xff]
    %v784 = vld [vmem:[#allocation5 + $0x370] sm:$0xff]
    %v785 = vld [vmem:[#allocation5 + $0x378] sm:$0xff]
    %v786 = vld [vmem:[#allocation5 + $0x380] sm:$0xff]
    %v787 = vld [vmem:[#allocation5 + $0x388] sm:$0xff]
    %v788 = vld [vmem:[#allocation5 + $0x390] sm:$0xff]
    %v789 = vld [vmem:[#allocation5 + $0x398] sm:$0xff]
    %v790 = vld [vmem:[#allocation5 + $0x3a0] sm:$0xff]
    %v791 = vld [vmem:[#allocation5 + $0x3a8] sm:$0xff]
    %v792 = vld [vmem:[#allocation5 + $0x3b0] sm:$0xff]
    %v793 = vld [vmem:[#allocation5 + $0x3b8] sm:$0xff]
    %v794 = vld [vmem:[#allocation5 + $0x3c0] sm:$0xff]
    %v795 = vld [vmem:[#allocation5 + $0x3c8] sm:$0xff]
    %v796 = vld [vmem:[#allocation5 + $0x3d0] sm:$0xff]
    %v797 = vld [vmem:[#allocation5 + $0x3d8] sm:$0xff]
    %v798 = vld [vmem:[#allocation5 + $0x3e0] sm:$0xff]
    %v799 = vld [vmem:[#allocation5 + $0x3e8] sm:$0xff]
    %v800 = vld [vmem:[#allocation5 + $0x3f0] sm:$0xff]
    %v801 = vld [vmem:[#allocation5 + $0x3f8] sm:$0xff]
    %v802 = vld [vmem:[%s4] sm:$0xf]
    %v804 = vperm.slane %v802, 0
    %v805 = vperm.slane %v802, 1
    %v806 = vperm.slane %v802, 2
    %v807 = vperm.slane %v802, 3
    %v940 = vunpack.c.l.b16 %v674
    %v941 = vunpack.c.h.b16 %v674
    %v942 = vunpack.c.l.b16 %v675
    %v943 = vunpack.c.h.b16 %v675
    %v944 = vunpack.c.l.b16 %v676
    %v945 = vunpack.c.h.b16 %v676
    %v946 = vunpack.c.l.b16 %v677
    %v947 = vunpack.c.h.b16 %v677
    %v948 = vunpack.c.l.b16 %v678
    %v949 = vunpack.c.h.b16 %v678
    %v950 = vunpack.c.l.b16 %v679
    %v951 = vunpack.c.h.b16 %v679
    %v952 = vunpack.c.l.b16 %v680
    %v953 = vunpack.c.h.b16 %v680
    %v954 = vunpack.c.l.b16 %v681
    %v955 = vunpack.c.h.b16 %v681
    %v956 = vunpack.c.l.b16 %v682
    %v957 = vunpack.c.h.b16 %v682
    %v958 = vunpack.c.l.b16 %v683
    %v959 = vunpack.c.h.b16 %v683
    %v960 = vunpack.c.l.b16 %v684
    %v961 = vunpack.c.h.b16 %v684
    %v962 = vunpack.c.l.b16 %v685
    %v963 = vunpack.c.h.b16 %v685
    %v964 = vunpack.c.l.b16 %v686
    %v965 = vunpack.c.h.b16 %v686
    %v966 = vunpack.c.l.b16 %v687
    %v967 = vunpack.c.h.b16 %v687
    %v968 = vunpack.c.l.b16 %v688
    %v969 = vunpack.c.h.b16 %v688
    %v970 = vunpack.c.l.b16 %v689
    %v971 = vunpack.c.h.b16 %v689
    %v972 = vunpack.c.l.b16 %v690
    %v973 = vunpack.c.h.b16 %v690
    %v974 = vunpack.c.l.b16 %v691
    %v975 = vunpack.c.h.b16 %v691
    %v976 = vunpack.c.l.b16 %v692
    %v977 = vunpack.c.h.b16 %v692
    %v978 = vunpack.c.l.b16 %v693
    %v979 = vunpack.c.h.b16 %v693
    %v980 = vunpack.c.l.b16 %v694
    %v981 = vunpack.c.h.b16 %v694
    %v982 = vunpack.c.l.b16 %v695
    %v983 = vunpack.c.h.b16 %v695
    %v984 = vunpack.c.l.b16 %v696
    %v985 = vunpack.c.h.b16 %v696
    %v986 = vunpack.c.l.b16 %v697
    %v987 = vunpack.c.h.b16 %v697
    %v988 = vunpack.c.l.b16 %v698
    %v989 = vunpack.c.h.b16 %v698
    %v990 = vunpack.c.l.b16 %v699
    %v991 = vunpack.c.h.b16 %v699
    %v992 = vunpack.c.l.b16 %v700
    %v993 = vunpack.c.h.b16 %v700
    %v994 = vunpack.c.l.b16 %v701
    %v995 = vunpack.c.h.b16 %v701
    %v996 = vunpack.c.l.b16 %v702
    %v997 = vunpack.c.h.b16 %v702
    %v998 = vunpack.c.l.b16 %v703
    %v999 = vunpack.c.h.b16 %v703
    %v1000 = vunpack.c.l.b16 %v704
    %v1001 = vunpack.c.h.b16 %v704
    %v1002 = vunpack.c.l.b16 %v705
    %v1003 = vunpack.c.h.b16 %v705
    %v1004 = vunpack.c.l.b16 %v706
    %v1005 = vunpack.c.h.b16 %v706
    %v1006 = vunpack.c.l.b16 %v707
    %v1007 = vunpack.c.h.b16 %v707
    %v1008 = vunpack.c.l.b16 %v708
    %v1009 = vunpack.c.h.b16 %v708
    %v1010 = vunpack.c.l.b16 %v709
    %v1011 = vunpack.c.h.b16 %v709
    %v1012 = vunpack.c.l.b16 %v710
    %v1013 = vunpack.c.h.b16 %v710
    %v1014 = vunpack.c.l.b16 %v711
    %v1015 = vunpack.c.h.b16 %v711
    %v1016 = vunpack.c.l.b16 %v712
    %v1017 = vunpack.c.h.b16 %v712
    %v1018 = vunpack.c.l.b16 %v713
    %v1019 = vunpack.c.h.b16 %v713
    %v1020 = vunpack.c.l.b16 %v714
    %v1021 = vunpack.c.h.b16 %v714
    %v1022 = vunpack.c.l.b16 %v715
    %v1023 = vunpack.c.h.b16 %v715
    %v1024 = vunpack.c.l.b16 %v716
    %v1025 = vunpack.c.h.b16 %v716
    %v1026 = vunpack.c.l.b16 %v717
    %v1027 = vunpack.c.h.b16 %v717
    %v1028 = vunpack.c.l.b16 %v718
    %v1029 = vunpack.c.h.b16 %v718
    %v1030 = vunpack.c.l.b16 %v719
    %v1031 = vunpack.c.h.b16 %v719
    %v1032 = vunpack.c.l.b16 %v720
    %v1033 = vunpack.c.h.b16 %v720
    %v1034 = vunpack.c.l.b16 %v721
    %v1035 = vunpack.c.h.b16 %v721
    %v1036 = vunpack.c.l.b16 %v722
    %v1037 = vunpack.c.h.b16 %v722
    %v1038 = vunpack.c.l.b16 %v723
    %v1039 = vunpack.c.h.b16 %v723
    %v1040 = vunpack.c.l.b16 %v724
    %v1041 = vunpack.c.h.b16 %v724
    %v1042 = vunpack.c.l.b16 %v725
    %v1043 = vunpack.c.h.b16 %v725
    %v1044 = vunpack.c.l.b16 %v726
    %v1045 = vunpack.c.h.b16 %v726
    %v1046 = vunpack.c.l.b16 %v727
    %v1047 = vunpack.c.h.b16 %v727
    %v1048 = vunpack.c.l.b16 %v728
    %v1049 = vunpack.c.h.b16 %v728
    %v1050 = vunpack.c.l.b16 %v729
    %v1051 = vunpack.c.h.b16 %v729
    %v1052 = vunpack.c.l.b16 %v730
    %v1053 = vunpack.c.h.b16 %v730
    %v1054 = vunpack.c.l.b16 %v731
    %v1055 = vunpack.c.h.b16 %v731
    %v1056 = vunpack.c.l.b16 %v732
    %v1057 = vunpack.c.h.b16 %v732
    %v1058 = vunpack.c.l.b16 %v733
    %v1059 = vunpack.c.h.b16 %v733
    %v1060 = vunpack.c.l.b16 %v734
    %v1061 = vunpack.c.h.b16 %v734
    %v1062 = vunpack.c.l.b16 %v735
    %v1063 = vunpack.c.h.b16 %v735
    %v1064 = vunpack.c.l.b16 %v736
    %v1065 = vunpack.c.h.b16 %v736
    %v1066 = vunpack.c.l.b16 %v737
    %v1067 = vunpack.c.h.b16 %v737
    %v1068 = vunpack.c.l.b16 %v738
    %v1069 = vunpack.c.h.b16 %v738
    %v1070 = vunpack.c.l.b16 %v739
    %v1071 = vunpack.c.h.b16 %v739
    %v1072 = vunpack.c.l.b16 %v740
    %v1073 = vunpack.c.h.b16 %v740
    %v1074 = vunpack.c.l.b16 %v741
    %v1075 = vunpack.c.h.b16 %v741
    %v1076 = vunpack.c.l.b16 %v742
    %v1077 = vunpack.c.h.b16 %v742
    %v1078 = vunpack.c.l.b16 %v743
    %v1079 = vunpack.c.h.b16 %v743
    %v1080 = vunpack.c.l.b16 %v744
    %v1081 = vunpack.c.h.b16 %v744
    %v1082 = vunpack.c.l.b16 %v745
    %v1083 = vunpack.c.h.b16 %v745
    %v1084 = vunpack.c.l.b16 %v746
    %v1085 = vunpack.c.h.b16 %v746
    %v1086 = vunpack.c.l.b16 %v747
    %v1087 = vunpack.c.h.b16 %v747
    %v1088 = vunpack.c.l.b16 %v748
    %v1089 = vunpack.c.h.b16 %v748
    %v1090 = vunpack.c.l.b16 %v749
    %v1091 = vunpack.c.h.b16 %v749
    %v1092 = vunpack.c.l.b16 %v750
    %v1093 = vunpack.c.h.b16 %v750
    %v1094 = vunpack.c.l.b16 %v751
    %v1095 = vunpack.c.h.b16 %v751
    %v1096 = vunpack.c.l.b16 %v752
    %v1097 = vunpack.c.h.b16 %v752
    %v1098 = vunpack.c.l.b16 %v753
    %v1099 = vunpack.c.h.b16 %v753
    %v1100 = vunpack.c.l.b16 %v754
    %v1101 = vunpack.c.h.b16 %v754
    %v1102 = vunpack.c.l.b16 %v755
    %v1103 = vunpack.c.h.b16 %v755
    %v1104 = vunpack.c.l.b16 %v756
    %v1105 = vunpack.c.h.b16 %v756
    %v1106 = vunpack.c.l.b16 %v757
    %v1107 = vunpack.c.h.b16 %v757
    %v1108 = vunpack.c.l.b16 %v758
    %v1109 = vunpack.c.h.b16 %v758
    %v1110 = vunpack.c.l.b16 %v759
    %v1111 = vunpack.c.h.b16 %v759
    %v1112 = vunpack.c.l.b16 %v760
    %v1113 = vunpack.c.h.b16 %v760
    %v1114 = vunpack.c.l.b16 %v761
    %v1115 = vunpack.c.h.b16 %v761
    %v1116 = vunpack.c.l.b16 %v762
    %v1117 = vunpack.c.h.b16 %v762
    %v1118 = vunpack.c.l.b16 %v763
    %v1119 = vunpack.c.h.b16 %v763
    %v1120 = vunpack.c.l.b16 %v764
    %v1121 = vunpack.c.h.b16 %v764
    %v1122 = vunpack.c.l.b16 %v765
    %v1123 = vunpack.c.h.b16 %v765
    %v1124 = vunpack.c.l.b16 %v766
    %v1125 = vunpack.c.h.b16 %v766
    %v1126 = vunpack.c.l.b16 %v767
    %v1127 = vunpack.c.h.b16 %v767
    %v1128 = vunpack.c.l.b16 %v768
    %v1129 = vunpack.c.h.b16 %v768
    %v1130 = vunpack.c.l.b16 %v769
    %v1131 = vunpack.c.h.b16 %v769
    %v1132 = vunpack.c.l.b16 %v770
    %v1133 = vunpack.c.h.b16 %v770
    %v1134 = vunpack.c.l.b16 %v771
    %v1135 = vunpack.c.h.b16 %v771
    %v1136 = vunpack.c.l.b16 %v772
    %v1137 = vunpack.c.h.b16 %v772
    %v1138 = vunpack.c.l.b16 %v773
    %v1139 = vunpack.c.h.b16 %v773
    %v1140 = vunpack.c.l.b16 %v774
    %v1141 = vunpack.c.h.b16 %v774
    %v1142 = vunpack.c.l.b16 %v775
    %v1143 = vunpack.c.h.b16 %v775
    %v1144 = vunpack.c.l.b16 %v776
    %v1145 = vunpack.c.h.b16 %v776
    %v1146 = vunpack.c.l.b16 %v777
    %v1147 = vunpack.c.h.b16 %v777
    %v1148 = vunpack.c.l.b16 %v778
    %v1149 = vunpack.c.h.b16 %v778
    %v1150 = vunpack.c.l.b16 %v779
    %v1151 = vunpack.c.h.b16 %v779
    %v1152 = vunpack.c.l.b16 %v780
    %v1153 = vunpack.c.h.b16 %v780
    %v1154 = vunpack.c.l.b16 %v781
    %v1155 = vunpack.c.h.b16 %v781
    %v1156 = vunpack.c.l.b16 %v782
    %v1157 = vunpack.c.h.b16 %v782
    %v1158 = vunpack.c.l.b16 %v783
    %v1159 = vunpack.c.h.b16 %v783
    %v1160 = vunpack.c.l.b16 %v784
    %v1161 = vunpack.c.h.b16 %v784
    %v1162 = vunpack.c.l.b16 %v785
    %v1163 = vunpack.c.h.b16 %v785
    %v1164 = vunpack.c.l.b16 %v786
    %v1165 = vunpack.c.h.b16 %v786
    %v1166 = vunpack.c.l.b16 %v787
    %v1167 = vunpack.c.h.b16 %v787
    %v1168 = vunpack.c.l.b16 %v788
    %v1169 = vunpack.c.h.b16 %v788
    %v1170 = vunpack.c.l.b16 %v789
    %v1171 = vunpack.c.h.b16 %v789
    %v1172 = vunpack.c.l.b16 %v790
    %v1173 = vunpack.c.h.b16 %v790
    %v1174 = vunpack.c.l.b16 %v791
    %v1175 = vunpack.c.h.b16 %v791
    %v1176 = vunpack.c.l.b16 %v792
    %v1177 = vunpack.c.h.b16 %v792
    %v1178 = vunpack.c.l.b16 %v793
    %v1179 = vunpack.c.h.b16 %v793
    %v1180 = vunpack.c.l.b16 %v794
    %v1181 = vunpack.c.h.b16 %v794
    %v1182 = vunpack.c.l.b16 %v795
    %v1183 = vunpack.c.h.b16 %v795
    %v1184 = vunpack.c.l.b16 %v796
    %v1185 = vunpack.c.h.b16 %v796
    %v1186 = vunpack.c.l.b16 %v797
    %v1187 = vunpack.c.h.b16 %v797
    %v1188 = vunpack.c.l.b16 %v798
    %v1189 = vunpack.c.h.b16 %v798
    %v1190 = vunpack.c.l.b16 %v799
    %v1191 = vunpack.c.h.b16 %v799
    %v1192 = vunpack.c.l.b16 %v800
    %v1193 = vunpack.c.h.b16 %v800
    %v1194 = vunpack.c.l.b16 %v801
    %v1195 = vunpack.c.h.b16 %v801
    %v1196 = vpack.c.b16 %v944, %v940
    %v1197 = vpack.c.b16 %v945, %v941
    %v1198 = vpack.c.b16 %v946, %v942
    %v1199 = vpack.c.b16 %v947, %v943
    %v1200 = vpack.c.b16 %v952, %v948
    %v1201 = vpack.c.b16 %v953, %v949
    %v1202 = vpack.c.b16 %v954, %v950
    %v1203 = vpack.c.b16 %v955, %v951
    %v1204 = vpack.c.b16 %v960, %v956
    %v1205 = vpack.c.b16 %v961, %v957
    %v1206 = vpack.c.b16 %v962, %v958
    %v1207 = vpack.c.b16 %v963, %v959
    %v1208 = vpack.c.b16 %v968, %v964
    %v1209 = vpack.c.b16 %v969, %v965
    %v1210 = vpack.c.b16 %v970, %v966
    %v1211 = vpack.c.b16 %v971, %v967
    %v1212 = vpack.c.b16 %v976, %v972
    %v1213 = vpack.c.b16 %v977, %v973
    %v1214 = vpack.c.b16 %v978, %v974
    %v1215 = vpack.c.b16 %v979, %v975
    %v1216 = vpack.c.b16 %v984, %v980
    %v1217 = vpack.c.b16 %v985, %v981
    %v1218 = vpack.c.b16 %v986, %v982
    %v1219 = vpack.c.b16 %v987, %v983
    %v1220 = vpack.c.b16 %v992, %v988
    %v1221 = vpack.c.b16 %v993, %v989
    %v1222 = vpack.c.b16 %v994, %v990
    %v1223 = vpack.c.b16 %v995, %v991
    %v1224 = vpack.c.b16 %v1000, %v996
    %v1225 = vpack.c.b16 %v1001, %v997
    %v1226 = vpack.c.b16 %v1002, %v998
    %v1227 = vpack.c.b16 %v1003, %v999
    %v1228 = vpack.c.b16 %v1008, %v1004
    %v1229 = vpack.c.b16 %v1009, %v1005
    %v1230 = vpack.c.b16 %v1010, %v1006
    %v1231 = vpack.c.b16 %v1011, %v1007
    %v1232 = vpack.c.b16 %v1016, %v1012
    %v1233 = vpack.c.b16 %v1017, %v1013
    %v1234 = vpack.c.b16 %v1018, %v1014
    %v1235 = vpack.c.b16 %v1019, %v1015
    %v1236 = vpack.c.b16 %v1024, %v1020
    %v1237 = vpack.c.b16 %v1025, %v1021
    %v1238 = vpack.c.b16 %v1026, %v1022
    %v1239 = vpack.c.b16 %v1027, %v1023
    %v1240 = vpack.c.b16 %v1032, %v1028
    %v1241 = vpack.c.b16 %v1033, %v1029
    %v1242 = vpack.c.b16 %v1034, %v1030
    %v1243 = vpack.c.b16 %v1035, %v1031
    %v1244 = vpack.c.b16 %v1040, %v1036
    %v1245 = vpack.c.b16 %v1041, %v1037
    %v1246 = vpack.c.b16 %v1042, %v1038
    %v1247 = vpack.c.b16 %v1043, %v1039
    %v1248 = vpack.c.b16 %v1048, %v1044
    %v1249 = vpack.c.b16 %v1049, %v1045
    %v1250 = vpack.c.b16 %v1050, %v1046
    %v1251 = vpack.c.b16 %v1051, %v1047
    %v1252 = vpack.c.b16 %v1056, %v1052
    %v1253 = vpack.c.b16 %v1057, %v1053
    %v1254 = vpack.c.b16 %v1058, %v1054
    %v1255 = vpack.c.b16 %v1059, %v1055
    %v1256 = vpack.c.b16 %v1064, %v1060
    %v1257 = vpack.c.b16 %v1065, %v1061
    %v1258 = vpack.c.b16 %v1066, %v1062
    %v1259 = vpack.c.b16 %v1067, %v1063
    %v1260 = vpack.c.b16 %v1072, %v1068
    %v1261 = vpack.c.b16 %v1073, %v1069
    %v1262 = vpack.c.b16 %v1074, %v1070
    %v1263 = vpack.c.b16 %v1075, %v1071
    %v1264 = vpack.c.b16 %v1080, %v1076
    %v1265 = vpack.c.b16 %v1081, %v1077
    %v1266 = vpack.c.b16 %v1082, %v1078
    %v1267 = vpack.c.b16 %v1083, %v1079
    %v1268 = vpack.c.b16 %v1088, %v1084
    %v1269 = vpack.c.b16 %v1089, %v1085
    %v1270 = vpack.c.b16 %v1090, %v1086
    %v1271 = vpack.c.b16 %v1091, %v1087
    %v1272 = vpack.c.b16 %v1096, %v1092
    %v1273 = vpack.c.b16 %v1097, %v1093
    %v1274 = vpack.c.b16 %v1098, %v1094
    %v1275 = vpack.c.b16 %v1099, %v1095
    %v1276 = vpack.c.b16 %v1104, %v1100
    %v1277 = vpack.c.b16 %v1105, %v1101
    %v1278 = vpack.c.b16 %v1106, %v1102
    %v1279 = vpack.c.b16 %v1107, %v1103
    %v1280 = vpack.c.b16 %v1112, %v1108
    %v1281 = vpack.c.b16 %v1113, %v1109
    %v1282 = vpack.c.b16 %v1114, %v1110
    %v1283 = vpack.c.b16 %v1115, %v1111
    %v1284 = vpack.c.b16 %v1120, %v1116
    %v1285 = vpack.c.b16 %v1121, %v1117
    %v1286 = vpack.c.b16 %v1122, %v1118
    %v1287 = vpack.c.b16 %v1123, %v1119
    %v1288 = vpack.c.b16 %v1128, %v1124
    %v1289 = vpack.c.b16 %v1129, %v1125
    %v1290 = vpack.c.b16 %v1130, %v1126
    %v1291 = vpack.c.b16 %v1131, %v1127
    %v1292 = vpack.c.b16 %v1136, %v1132
    %v1293 = vpack.c.b16 %v1137, %v1133
    %v1294 = vpack.c.b16 %v1138, %v1134
    %v1295 = vpack.c.b16 %v1139, %v1135
    %v1296 = vpack.c.b16 %v1144, %v1140
    %v1297 = vpack.c.b16 %v1145, %v1141
    %v1298 = vpack.c.b16 %v1146, %v1142
    %v1299 = vpack.c.b16 %v1147, %v1143
    %v1300 = vpack.c.b16 %v1152, %v1148
    %v1301 = vpack.c.b16 %v1153, %v1149
    %v1302 = vpack.c.b16 %v1154, %v1150
    %v1303 = vpack.c.b16 %v1155, %v1151
    %v1304 = vpack.c.b16 %v1160, %v1156
    %v1305 = vpack.c.b16 %v1161, %v1157
    %v1306 = vpack.c.b16 %v1162, %v1158
    %v1307 = vpack.c.b16 %v1163, %v1159
    %v1308 = vpack.c.b16 %v1168, %v1164
    %v1309 = vpack.c.b16 %v1169, %v1165
    %v1310 = vpack.c.b16 %v1170, %v1166
    %v1311 = vpack.c.b16 %v1171, %v1167
    %v1312 = vpack.c.b16 %v1176, %v1172
    %v1313 = vpack.c.b16 %v1177, %v1173
    %v1314 = vpack.c.b16 %v1178, %v1174
    %v1315 = vpack.c.b16 %v1179, %v1175
    %v1316 = vpack.c.b16 %v1184, %v1180
    %v1317 = vpack.c.b16 %v1185, %v1181
    %v1318 = vpack.c.b16 %v1186, %v1182
    %v1319 = vpack.c.b16 %v1187, %v1183
    %v1320 = vpack.c.b16 %v1192, %v1188
    %v1321 = vpack.c.b16 %v1193, %v1189
    %v1322 = vpack.c.b16 %v1194, %v1190
    %v1323 = vpack.c.b16 %v1195, %v1191
    %1452 = vmatpush.bf16.msra.mxu0 %v1224
    %1453 = vmatpush.bf16.msra.mxu0 %v1220
    %1454 = vmatpush.bf16.msra.mxu0 %v1216
    %1455 = vmatpush.bf16.msra.mxu0 %v1212
    %1456 = vmatpush.bf16.msra.mxu0 %v1208
    %1457 = vmatpush.bf16.msra.mxu0 %v1204
    %1458 = vmatpush.bf16.msra.mxu0 %v1200
    %1459 = vmatpush.bf16.msra.mxu0 %v1196
    %1460 = vmatmul.bf16.gmra.mxu0 %v670
    %v1461 = vpop.f32.mrf.mxu0
    %v1462 = vadd.f32 %v804, %v1461
    %v1463 = vpop.f32.mrf.mxu0
    %1464 = vdwg.mxu0
    %1465 = vmatpush.bf16.msra.mxu0 %v1256
    %1466 = vmatpush.bf16.msra.mxu0 %v1252
    %1467 = vmatpush.bf16.msra.mxu0 %v1248
    %1468 = vmatpush.bf16.msra.mxu0 %v1244
    %1469 = vmatpush.bf16.msra.mxu0 %v1240
    %1470 = vmatpush.bf16.msra.mxu0 %v1236
    %1471 = vmatpush.bf16.msra.mxu0 %v1232
    %1472 = vmatpush.bf16.msra.mxu0 %v1228
    %1473 = vmatmul.bf16.gmra.mxu0 %v671
    %v1474 = vpop.f32.mrf.mxu0
    %v1475 = vadd.f32 %v1462, %v1474
    %v1476 = vpop.f32.mrf.mxu0
    %1477 = vdwg.mxu0
    %1478 = vmatpush.bf16.msra.mxu0 %v1288
    %1479 = vmatpush.bf16.msra.mxu0 %v1284
    %1480 = vmatpush.bf16.msra.mxu0 %v1280
    %1481 = vmatpush.bf16.msra.mxu0 %v1276
    %1482 = vmatpush.bf16.msra.mxu0 %v1272
    %1483 = vmatpush.bf16.msra.mxu0 %v1268
    %1484 = vmatpush.bf16.msra.mxu0 %v1264
    %1485 = vmatpush.bf16.msra.mxu0 %v1260
    %1486 = vmatmul.bf16.gmra.mxu0 %v672
    %v1487 = vpop.f32.mrf.mxu0
    %v1488 = vadd.f32 %v1475, %v1487
    %v1489 = vpop.f32.mrf.mxu0
    %1490 = vdwg.mxu0
    %1491 = vmatpush.bf16.msra.mxu0 %v1320
    %1492 = vmatpush.bf16.msra.mxu0 %v1316
    %1493 = vmatpush.bf16.msra.mxu0 %v1312
    %1494 = vmatpush.bf16.msra.mxu0 %v1308
    %1495 = vmatpush.bf16.msra.mxu0 %v1304
    %1496 = vmatpush.bf16.msra.mxu0 %v1300
    %1497 = vmatpush.bf16.msra.mxu0 %v1296
    %1498 = vmatpush.bf16.msra.mxu0 %v1292
    %1499 = vmatmul.bf16.gmra.mxu0 %v673
    %v1500 = vpop.f32.mrf.mxu0
    %v1501 = vadd.f32 %v1488, %v1500
    %v1502 = vpop.f32.mrf.mxu0
    %1503 = vdwg.mxu0
    %1504 = vmatpush.bf16.msra.mxu0 %v1225
    %1505 = vmatpush.bf16.msra.mxu0 %v1221
    %1506 = vmatpush.bf16.msra.mxu0 %v1217
    %1507 = vmatpush.bf16.msra.mxu0 %v1213
    %1508 = vmatpush.bf16.msra.mxu0 %v1209
    %1509 = vmatpush.bf16.msra.mxu0 %v1205
    %1510 = vmatpush.bf16.msra.mxu0 %v1201
    %1511 = vmatpush.bf16.msra.mxu0 %v1197
    %1512 = vmatmul.bf16.gmra.mxu0 %v670
    %v1513 = vpop.f32.mrf.mxu0
    %v1514 = vadd.f32 %v805, %v1513
    %v1515 = vpop.f32.mrf.mxu0
    %1516 = vdwg.mxu0
    %1517 = vmatpush.bf16.msra.mxu0 %v1257
    %1518 = vmatpush.bf16.msra.mxu0 %v1253
    %1519 = vmatpush.bf16.msra.mxu0 %v1249
    %1520 = vmatpush.bf16.msra.mxu0 %v1245
    %1521 = vmatpush.bf16.msra.mxu0 %v1241
    %1522 = vmatpush.bf16.msra.mxu0 %v1237
    %1523 = vmatpush.bf16.msra.mxu0 %v1233
    %1524 = vmatpush.bf16.msra.mxu0 %v1229
    %1525 = vmatmul.bf16.gmra.mxu0 %v671
    %v1526 = vpop.f32.mrf.mxu0
    %v1527 = vadd.f32 %v1514, %v1526
    %v1528 = vpop.f32.mrf.mxu0
    %1529 = vdwg.mxu0
    %1530 = vmatpush.bf16.msra.mxu0 %v1289
    %1531 = vmatpush.bf16.msra.mxu0 %v1285
    %1532 = vmatpush.bf16.msra.mxu0 %v1281
    %1533 = vmatpush.bf16.msra.mxu0 %v1277
    %1534 = vmatpush.bf16.msra.mxu0 %v1273
    %1535 = vmatpush.bf16.msra.mxu0 %v1269
    %1536 = vmatpush.bf16.msra.mxu0 %v1265
    %1537 = vmatpush.bf16.msra.mxu0 %v1261
    %1538 = vmatmul.bf16.gmra.mxu0 %v672
    %v1539 = vpop.f32.mrf.mxu0
    %v1540 = vadd.f32 %v1527, %v1539
    %v1541 = vpop.f32.mrf.mxu0
    %1542 = vdwg.mxu0
    %1543 = vmatpush.bf16.msra.mxu0 %v1321
    %1544 = vmatpush.bf16.msra.mxu0 %v1317
    %1545 = vmatpush.bf16.msra.mxu0 %v1313
    %1546 = vmatpush.bf16.msra.mxu0 %v1309
    %1547 = vmatpush.bf16.msra.mxu0 %v1305
    %1548 = vmatpush.bf16.msra.mxu0 %v1301
    %1549 = vmatpush.bf16.msra.mxu0 %v1297
    %1550 = vmatpush.bf16.msra.mxu0 %v1293
    %1551 = vmatmul.bf16.gmra.mxu0 %v673
    %v1552 = vpop.f32.mrf.mxu0
    %v1553 = vadd.f32 %v1540, %v1552
    %v1554 = vpop.f32.mrf.mxu0
    %1555 = vdwg.mxu0
    %1556 = vmatpush.bf16.msra.mxu0 %v1226
    %1557 = vmatpush.bf16.msra.mxu0 %v1222
    %1558 = vmatpush.bf16.msra.mxu0 %v1218
    %1559 = vmatpush.bf16.msra.mxu0 %v1214
    %1560 = vmatpush.bf16.msra.mxu0 %v1210
    %1561 = vmatpush.bf16.msra.mxu0 %v1206
    %1562 = vmatpush.bf16.msra.mxu0 %v1202
    %1563 = vmatpush.bf16.msra.mxu0 %v1198
    %1564 = vmatmul.bf16.gmra.mxu0 %v670
    %v1565 = vpop.f32.mrf.mxu0
    %v1566 = vadd.f32 %v806, %v1565
    %v1567 = vpop.f32.mrf.mxu0
    %1568 = vdwg.mxu0
    %1569 = vmatpush.bf16.msra.mxu0 %v1258
    %1570 = vmatpush.bf16.msra.mxu0 %v1254
    %1571 = vmatpush.bf16.msra.mxu0 %v1250
    %1572 = vmatpush.bf16.msra.mxu0 %v1246
    %1573 = vmatpush.bf16.msra.mxu0 %v1242
    %1574 = vmatpush.bf16.msra.mxu0 %v1238
    %1575 = vmatpush.bf16.msra.mxu0 %v1234
    %1576 = vmatpush.bf16.msra.mxu0 %v1230
    %1577 = vmatmul.bf16.gmra.mxu0 %v671
    %v1578 = vpop.f32.mrf.mxu0
    %v1579 = vadd.f32 %v1566, %v1578
    %v1580 = vpop.f32.mrf.mxu0
    %1581 = vdwg.mxu0
    %1582 = vmatpush.bf16.msra.mxu0 %v1290
    %1583 = vmatpush.bf16.msra.mxu0 %v1286
    %1584 = vmatpush.bf16.msra.mxu0 %v1282
    %1585 = vmatpush.bf16.msra.mxu0 %v1278
    %1586 = vmatpush.bf16.msra.mxu0 %v1274
    %1587 = vmatpush.bf16.msra.mxu0 %v1270
    %1588 = vmatpush.bf16.msra.mxu0 %v1266
    %1589 = vmatpush.bf16.msra.mxu0 %v1262
    %1590 = vmatmul.bf16.gmra.mxu0 %v672
    %v1591 = vpop.f32.mrf.mxu0
    %v1592 = vadd.f32 %v1579, %v1591
    %v1593 = vpop.f32.mrf.mxu0
    %1594 = vdwg.mxu0
    %1595 = vmatpush.bf16.msra.mxu0 %v1322
    %1596 = vmatpush.bf16.msra.mxu0 %v1318
    %1597 = vmatpush.bf16.msra.mxu0 %v1314
    %1598 = vmatpush.bf16.msra.mxu0 %v1310
    %1599 = vmatpush.bf16.msra.mxu0 %v1306
    %1600 = vmatpush.bf16.msra.mxu0 %v1302
    %1601 = vmatpush.bf16.msra.mxu0 %v1298
    %1602 = vmatpush.bf16.msra.mxu0 %v1294
    %1603 = vmatmul.bf16.gmra.mxu0 %v673
    %v1604 = vpop.f32.mrf.mxu0
    %v1605 = vadd.f32 %v1592, %v1604
    %v1606 = vpop.f32.mrf.mxu0
    %1607 = vdwg.mxu0
    %1608 = vmatpush.bf16.msra.mxu0 %v1227
    %1609 = vmatpush.bf16.msra.mxu0 %v1223
    %1610 = vmatpush.bf16.msra.mxu0 %v1219
    %1611 = vmatpush.bf16.msra.mxu0 %v1215
    %1612 = vmatpush.bf16.msra.mxu0 %v1211
    %1613 = vmatpush.bf16.msra.mxu0 %v1207
    %1614 = vmatpush.bf16.msra.mxu0 %v1203
    %1615 = vmatpush.bf16.msra.mxu0 %v1199
    %1616 = vmatmul.bf16.gmra.mxu0 %v670
    %v1617 = vpop.f32.mrf.mxu0
    %v1618 = vadd.f32 %v807, %v1617
    %v1619 = vpop.f32.mrf.mxu0
    %1620 = vdwg.mxu0
    %1621 = vmatpush.bf16.msra.mxu0 %v1259
    %1622 = vmatpush.bf16.msra.mxu0 %v1255
    %1623 = vmatpush.bf16.msra.mxu0 %v1251
    %1624 = vmatpush.bf16.msra.mxu0 %v1247
    %1625 = vmatpush.bf16.msra.mxu0 %v1243
    %1626 = vmatpush.bf16.msra.mxu0 %v1239
    %1627 = vmatpush.bf16.msra.mxu0 %v1235
    %1628 = vmatpush.bf16.msra.mxu0 %v1231
    %1629 = vmatmul.bf16.gmra.mxu0 %v671
    %v1630 = vpop.f32.mrf.mxu0
    %v1631 = vadd.f32 %v1618, %v1630
    %v1632 = vpop.f32.mrf.mxu0
    %1633 = vdwg.mxu0
    %1634 = vmatpush.bf16.msra.mxu0 %v1291
    %1635 = vmatpush.bf16.msra.mxu0 %v1287
    %1636 = vmatpush.bf16.msra.mxu0 %v1283
    %1637 = vmatpush.bf16.msra.mxu0 %v1279
    %1638 = vmatpush.bf16.msra.mxu0 %v1275
    %1639 = vmatpush.bf16.msra.mxu0 %v1271
    %1640 = vmatpush.bf16.msra.mxu0 %v1267
    %1641 = vmatpush.bf16.msra.mxu0 %v1263
    %1642 = vmatmul.bf16.gmra.mxu0 %v672
    %v1643 = vpop.f32.mrf.mxu0
    %v1644 = vadd.f32 %v1631, %v1643
    %v1645 = vpop.f32.mrf.mxu0
    %1646 = vdwg.mxu0
    %1647 = vmatpush.bf16.msra.mxu0 %v1323
    %1648 = vmatpush.bf16.msra.mxu0 %v1319
    %1649 = vmatpush.bf16.msra.mxu0 %v1315
    %1650 = vmatpush.bf16.msra.mxu0 %v1311
    %1651 = vmatpush.bf16.msra.mxu0 %v1307
    %1652 = vmatpush.bf16.msra.mxu0 %v1303
    %1653 = vmatpush.bf16.msra.mxu0 %v1299
    %1654 = vmatpush.bf16.msra.mxu0 %v1295
    %1655 = vmatmul.bf16.gmra.mxu0 %v673
    %v1656 = vpop.f32.mrf.mxu0
    %v1657 = vadd.f32 %v1644, %v1656
    %v1658 = vpop.f32.mrf.mxu0
    %1659 = vdwg.mxu0
    %v1660 = vmax.f32 %v1501, 0.0
    %v1661 = vmax.f32 %v1553, 0.0
    %v1662 = vmax.f32 %v1605, 0.0
    %v1663 = vmax.f32 %v1657, 0.0
    %v1664 = vpack.c.bf16 %v1660, %v1660
    %v1665 = vpack.c.bf16 %v1661, %v1661
    %v1666 = vpack.c.bf16 %v1662, %v1662
    %v1667 = vpack.c.bf16 %v1663, %v1663
    %v1668 = vld [vmem:[#allocation7] sm:$0xff]
    %v1669 = vld [vmem:[#allocation7 + $0x8] sm:$0xff]
    %v1670 = vld [vmem:[#allocation7 + $0x10] sm:$0xff]
    %v1671 = vld [vmem:[#allocation7 + $0x18] sm:$0xff]
    %v1672 = vld [vmem:[#allocation7 + $0x20] sm:$0xff]
    %v1673 = vld [vmem:[#allocation7 + $0x28] sm:$0xff]
    %v1674 = vld [vmem:[#allocation7 + $0x30] sm:$0xff]
    %v1675 = vld [vmem:[#allocation7 + $0x38] sm:$0xff]
    %v1676 = vld [vmem:[#allocation7 + $0x40] sm:$0xff]
    %v1677 = vld [vmem:[#allocation7 + $0x48] sm:$0xff]
    %v1678 = vld [vmem:[#allocation7 + $0x50] sm:$0xff]
    %v1679 = vld [vmem:[#allocation7 + $0x58] sm:$0xff]
    %v1680 = vld [vmem:[#allocation7 + $0x60] sm:$0xff]
    %v1681 = vld [vmem:[#allocation7 + $0x68] sm:$0xff]
    %v1682 = vld [vmem:[#allocation7 + $0x70] sm:$0xff]
    %v1683 = vld [vmem:[#allocation7 + $0x78] sm:$0xff]
    %v1684 = vld [vmem:[#allocation7 + $0x80] sm:$0xff]
    %v1685 = vld [vmem:[#allocation7 + $0x88] sm:$0xff]
    %v1686 = vld [vmem:[#allocation7 + $0x90] sm:$0xff]
    %v1687 = vld [vmem:[#allocation7 + $0x98] sm:$0xff]
    %v1688 = vld [vmem:[#allocation7 + $0xa0] sm:$0xff]
    %v1689 = vld [vmem:[#allocation7 + $0xa8] sm:$0xff]
    %v1690 = vld [vmem:[#allocation7 + $0xb0] sm:$0xff]
    %v1691 = vld [vmem:[#allocation7 + $0xb8] sm:$0xff]
    %v1692 = vld [vmem:[#allocation7 + $0xc0] sm:$0xff]
    %v1693 = vld [vmem:[#allocation7 + $0xc8] sm:$0xff]
    %v1694 = vld [vmem:[#allocation7 + $0xd0] sm:$0xff]
    %v1695 = vld [vmem:[#allocation7 + $0xd8] sm:$0xff]
    %v1696 = vld [vmem:[#allocation7 + $0xe0] sm:$0xff]
    %v1697 = vld [vmem:[#allocation7 + $0xe8] sm:$0xff]
    %v1698 = vld [vmem:[#allocation7 + $0xf0] sm:$0xff]
    %v1699 = vld [vmem:[#allocation7 + $0xf8] sm:$0xff]
    %v1700 = vld [vmem:[#allocation7 + $0x100] sm:$0xff]
    %v1701 = vld [vmem:[#allocation7 + $0x108] sm:$0xff]
    %v1702 = vld [vmem:[#allocation7 + $0x110] sm:$0xff]
    %v1703 = vld [vmem:[#allocation7 + $0x118] sm:$0xff]
    %v1704 = vld [vmem:[#allocation7 + $0x120] sm:$0xff]
    %v1705 = vld [vmem:[#allocation7 + $0x128] sm:$0xff]
    %v1706 = vld [vmem:[#allocation7 + $0x130] sm:$0xff]
    %v1707 = vld [vmem:[#allocation7 + $0x138] sm:$0xff]
    %v1708 = vld [vmem:[#allocation7 + $0x140] sm:$0xff]
    %v1709 = vld [vmem:[#allocation7 + $0x148] sm:$0xff]
    %v1710 = vld [vmem:[#allocation7 + $0x150] sm:$0xff]
    %v1711 = vld [vmem:[#allocation7 + $0x158] sm:$0xff]
    %v1712 = vld [vmem:[#allocation7 + $0x160] sm:$0xff]
    %v1713 = vld [vmem:[#allocation7 + $0x168] sm:$0xff]
    %v1714 = vld [vmem:[#allocation7 + $0x170] sm:$0xff]
    %v1715 = vld [vmem:[#allocation7 + $0x178] sm:$0xff]
    %v1716 = vld [vmem:[#allocation7 + $0x180] sm:$0xff]
    %v1717 = vld [vmem:[#allocation7 + $0x188] sm:$0xff]
    %v1718 = vld [vmem:[#allocation7 + $0x190] sm:$0xff]
    %v1719 = vld [vmem:[#allocation7 + $0x198] sm:$0xff]
    %v1720 = vld [vmem:[#allocation7 + $0x1a0] sm:$0xff]
    %v1721 = vld [vmem:[#allocation7 + $0x1a8] sm:$0xff]
    %v1722 = vld [vmem:[#allocation7 + $0x1b0] sm:$0xff]
    %v1723 = vld [vmem:[#allocation7 + $0x1b8] sm:$0xff]
    %v1724 = vld [vmem:[#allocation7 + $0x1c0] sm:$0xff]
    %v1725 = vld [vmem:[#allocation7 + $0x1c8] sm:$0xff]
    %v1726 = vld [vmem:[#allocation7 + $0x1d0] sm:$0xff]
    %v1727 = vld [vmem:[#allocation7 + $0x1d8] sm:$0xff]
    %v1728 = vld [vmem:[#allocation7 + $0x1e0] sm:$0xff]
    %v1729 = vld [vmem:[#allocation7 + $0x1e8] sm:$0xff]
    %v1730 = vld [vmem:[#allocation7 + $0x1f0] sm:$0xff]
    %v1731 = vld [vmem:[#allocation7 + $0x1f8] sm:$0xff]
    %v1732 = vld [vmem:[#allocation7 + $0x200] sm:$0xff]
    %v1733 = vld [vmem:[#allocation7 + $0x208] sm:$0xff]
    %v1734 = vld [vmem:[#allocation7 + $0x210] sm:$0xff]
    %v1735 = vld [vmem:[#allocation7 + $0x218] sm:$0xff]
    %v1736 = vld [vmem:[#allocation7 + $0x220] sm:$0xff]
    %v1737 = vld [vmem:[#allocation7 + $0x228] sm:$0xff]
    %v1738 = vld [vmem:[#allocation7 + $0x230] sm:$0xff]
    %v1739 = vld [vmem:[#allocation7 + $0x238] sm:$0xff]
    %v1740 = vld [vmem:[#allocation7 + $0x240] sm:$0xff]
    %v1741 = vld [vmem:[#allocation7 + $0x248] sm:$0xff]
    %v1742 = vld [vmem:[#allocation7 + $0x250] sm:$0xff]
    %v1743 = vld [vmem:[#allocation7 + $0x258] sm:$0xff]
    %v1744 = vld [vmem:[#allocation7 + $0x260] sm:$0xff]
    %v1745 = vld [vmem:[#allocation7 + $0x268] sm:$0xff]
    %v1746 = vld [vmem:[#allocation7 + $0x270] sm:$0xff]
    %v1747 = vld [vmem:[#allocation7 + $0x278] sm:$0xff]
    %v1748 = vld [vmem:[#allocation7 + $0x280] sm:$0xff]
    %v1749 = vld [vmem:[#allocation7 + $0x288] sm:$0xff]
    %v1750 = vld [vmem:[#allocation7 + $0x290] sm:$0xff]
    %v1751 = vld [vmem:[#allocation7 + $0x298] sm:$0xff]
    %v1752 = vld [vmem:[#allocation7 + $0x2a0] sm:$0xff]
    %v1753 = vld [vmem:[#allocation7 + $0x2a8] sm:$0xff]
    %v1754 = vld [vmem:[#allocation7 + $0x2b0] sm:$0xff]
    %v1755 = vld [vmem:[#allocation7 + $0x2b8] sm:$0xff]
    %v1756 = vld [vmem:[#allocation7 + $0x2c0] sm:$0xff]
    %v1757 = vld [vmem:[#allocation7 + $0x2c8] sm:$0xff]
    %v1758 = vld [vmem:[#allocation7 + $0x2d0] sm:$0xff]
    %v1759 = vld [vmem:[#allocation7 + $0x2d8] sm:$0xff]
    %v1760 = vld [vmem:[#allocation7 + $0x2e0] sm:$0xff]
    %v1761 = vld [vmem:[#allocation7 + $0x2e8] sm:$0xff]
    %v1762 = vld [vmem:[#allocation7 + $0x2f0] sm:$0xff]
    %v1763 = vld [vmem:[#allocation7 + $0x2f8] sm:$0xff]
    %v1764 = vld [vmem:[#allocation7 + $0x300] sm:$0xff]
    %v1765 = vld [vmem:[#allocation7 + $0x308] sm:$0xff]
    %v1766 = vld [vmem:[#allocation7 + $0x310] sm:$0xff]
    %v1767 = vld [vmem:[#allocation7 + $0x318] sm:$0xff]
    %v1768 = vld [vmem:[#allocation7 + $0x320] sm:$0xff]
    %v1769 = vld [vmem:[#allocation7 + $0x328] sm:$0xff]
    %v1770 = vld [vmem:[#allocation7 + $0x330] sm:$0xff]
    %v1771 = vld [vmem:[#allocation7 + $0x338] sm:$0xff]
    %v1772 = vld [vmem:[#allocation7 + $0x340] sm:$0xff]
    %v1773 = vld [vmem:[#allocation7 + $0x348] sm:$0xff]
    %v1774 = vld [vmem:[#allocation7 + $0x350] sm:$0xff]
    %v1775 = vld [vmem:[#allocation7 + $0x358] sm:$0xff]
    %v1776 = vld [vmem:[#allocation7 + $0x360] sm:$0xff]
    %v1777 = vld [vmem:[#allocation7 + $0x368] sm:$0xff]
    %v1778 = vld [vmem:[#allocation7 + $0x370] sm:$0xff]
    %v1779 = vld [vmem:[#allocation7 + $0x378] sm:$0xff]
    %v1780 = vld [vmem:[#allocation7 + $0x380] sm:$0xff]
    %v1781 = vld [vmem:[#allocation7 + $0x388] sm:$0xff]
    %v1782 = vld [vmem:[#allocation7 + $0x390] sm:$0xff]
    %v1783 = vld [vmem:[#allocation7 + $0x398] sm:$0xff]
    %v1784 = vld [vmem:[#allocation7 + $0x3a0] sm:$0xff]
    %v1785 = vld [vmem:[#allocation7 + $0x3a8] sm:$0xff]
    %v1786 = vld [vmem:[#allocation7 + $0x3b0] sm:$0xff]
    %v1787 = vld [vmem:[#allocation7 + $0x3b8] sm:$0xff]
    %v1788 = vld [vmem:[#allocation7 + $0x3c0] sm:$0xff]
    %v1789 = vld [vmem:[#allocation7 + $0x3c8] sm:$0xff]
    %v1790 = vld [vmem:[#allocation7 + $0x3d0] sm:$0xff]
    %v1791 = vld [vmem:[#allocation7 + $0x3d8] sm:$0xff]
    %v1792 = vld [vmem:[#allocation7 + $0x3e0] sm:$0xff]
    %v1793 = vld [vmem:[#allocation7 + $0x3e8] sm:$0xff]
    %v1794 = vld [vmem:[#allocation7 + $0x3f0] sm:$0xff]
    %v1795 = vld [vmem:[#allocation7 + $0x3f8] sm:$0xff]
    %v1796 = vld [vmem:[%s6] sm:$0xf]
    %v1798 = vperm.slane %v1796, 0
    %v1799 = vperm.slane %v1796, 1
    %v1800 = vperm.slane %v1796, 2
    %v1801 = vperm.slane %v1796, 3
    %v1934 = vunpack.c.l.b16 %v1668
    %v1935 = vunpack.c.h.b16 %v1668
    %v1936 = vunpack.c.l.b16 %v1669
    %v1937 = vunpack.c.h.b16 %v1669
    %v1938 = vunpack.c.l.b16 %v1670
    %v1939 = vunpack.c.h.b16 %v1670
    %v1940 = vunpack.c.l.b16 %v1671
    %v1941 = vunpack.c.h.b16 %v1671
    %v1942 = vunpack.c.l.b16 %v1672
    %v1943 = vunpack.c.h.b16 %v1672
    %v1944 = vunpack.c.l.b16 %v1673
    %v1945 = vunpack.c.h.b16 %v1673
    %v1946 = vunpack.c.l.b16 %v1674
    %v1947 = vunpack.c.h.b16 %v1674
    %v1948 = vunpack.c.l.b16 %v1675
    %v1949 = vunpack.c.h.b16 %v1675
    %v1950 = vunpack.c.l.b16 %v1676
    %v1951 = vunpack.c.h.b16 %v1676
    %v1952 = vunpack.c.l.b16 %v1677
    %v1953 = vunpack.c.h.b16 %v1677
    %v1954 = vunpack.c.l.b16 %v1678
    %v1955 = vunpack.c.h.b16 %v1678
    %v1956 = vunpack.c.l.b16 %v1679
    %v1957 = vunpack.c.h.b16 %v1679
    %v1958 = vunpack.c.l.b16 %v1680
    %v1959 = vunpack.c.h.b16 %v1680
    %v1960 = vunpack.c.l.b16 %v1681
    %v1961 = vunpack.c.h.b16 %v1681
    %v1962 = vunpack.c.l.b16 %v1682
    %v1963 = vunpack.c.h.b16 %v1682
    %v1964 = vunpack.c.l.b16 %v1683
    %v1965 = vunpack.c.h.b16 %v1683
    %v1966 = vunpack.c.l.b16 %v1684
    %v1967 = vunpack.c.h.b16 %v1684
    %v1968 = vunpack.c.l.b16 %v1685
    %v1969 = vunpack.c.h.b16 %v1685
    %v1970 = vunpack.c.l.b16 %v1686
    %v1971 = vunpack.c.h.b16 %v1686
    %v1972 = vunpack.c.l.b16 %v1687
    %v1973 = vunpack.c.h.b16 %v1687
    %v1974 = vunpack.c.l.b16 %v1688
    %v1975 = vunpack.c.h.b16 %v1688
    %v1976 = vunpack.c.l.b16 %v1689
    %v1977 = vunpack.c.h.b16 %v1689
    %v1978 = vunpack.c.l.b16 %v1690
    %v1979 = vunpack.c.h.b16 %v1690
    %v1980 = vunpack.c.l.b16 %v1691
    %v1981 = vunpack.c.h.b16 %v1691
    %v1982 = vunpack.c.l.b16 %v1692
    %v1983 = vunpack.c.h.b16 %v1692
    %v1984 = vunpack.c.l.b16 %v1693
    %v1985 = vunpack.c.h.b16 %v1693
    %v1986 = vunpack.c.l.b16 %v1694
    %v1987 = vunpack.c.h.b16 %v1694
    %v1988 = vunpack.c.l.b16 %v1695
    %v1989 = vunpack.c.h.b16 %v1695
    %v1990 = vunpack.c.l.b16 %v1696
    %v1991 = vunpack.c.h.b16 %v1696
    %v1992 = vunpack.c.l.b16 %v1697
    %v1993 = vunpack.c.h.b16 %v1697
    %v1994 = vunpack.c.l.b16 %v1698
    %v1995 = vunpack.c.h.b16 %v1698
    %v1996 = vunpack.c.l.b16 %v1699
    %v1997 = vunpack.c.h.b16 %v1699
    %v1998 = vunpack.c.l.b16 %v1700
    %v1999 = vunpack.c.h.b16 %v1700
    %v2000 = vunpack.c.l.b16 %v1701
    %v2001 = vunpack.c.h.b16 %v1701
    %v2002 = vunpack.c.l.b16 %v1702
    %v2003 = vunpack.c.h.b16 %v1702
    %v2004 = vunpack.c.l.b16 %v1703
    %v2005 = vunpack.c.h.b16 %v1703
    %v2006 = vunpack.c.l.b16 %v1704
    %v2007 = vunpack.c.h.b16 %v1704
    %v2008 = vunpack.c.l.b16 %v1705
    %v2009 = vunpack.c.h.b16 %v1705
    %v2010 = vunpack.c.l.b16 %v1706
    %v2011 = vunpack.c.h.b16 %v1706
    %v2012 = vunpack.c.l.b16 %v1707
    %v2013 = vunpack.c.h.b16 %v1707
    %v2014 = vunpack.c.l.b16 %v1708
    %v2015 = vunpack.c.h.b16 %v1708
    %v2016 = vunpack.c.l.b16 %v1709
    %v2017 = vunpack.c.h.b16 %v1709
    %v2018 = vunpack.c.l.b16 %v1710
    %v2019 = vunpack.c.h.b16 %v1710
    %v2020 = vunpack.c.l.b16 %v1711
    %v2021 = vunpack.c.h.b16 %v1711
    %v2022 = vunpack.c.l.b16 %v1712
    %v2023 = vunpack.c.h.b16 %v1712
    %v2024 = vunpack.c.l.b16 %v1713
    %v2025 = vunpack.c.h.b16 %v1713
    %v2026 = vunpack.c.l.b16 %v1714
    %v2027 = vunpack.c.h.b16 %v1714
    %v2028 = vunpack.c.l.b16 %v1715
    %v2029 = vunpack.c.h.b16 %v1715
    %v2030 = vunpack.c.l.b16 %v1716
    %v2031 = vunpack.c.h.b16 %v1716
    %v2032 = vunpack.c.l.b16 %v1717
    %v2033 = vunpack.c.h.b16 %v1717
    %v2034 = vunpack.c.l.b16 %v1718
    %v2035 = vunpack.c.h.b16 %v1718
    %v2036 = vunpack.c.l.b16 %v1719
    %v2037 = vunpack.c.h.b16 %v1719
    %v2038 = vunpack.c.l.b16 %v1720
    %v2039 = vunpack.c.h.b16 %v1720
    %v2040 = vunpack.c.l.b16 %v1721
    %v2041 = vunpack.c.h.b16 %v1721
    %v2042 = vunpack.c.l.b16 %v1722
    %v2043 = vunpack.c.h.b16 %v1722
    %v2044 = vunpack.c.l.b16 %v1723
    %v2045 = vunpack.c.h.b16 %v1723
    %v2046 = vunpack.c.l.b16 %v1724
    %v2047 = vunpack.c.h.b16 %v1724
    %v2048 = vunpack.c.l.b16 %v1725
    %v2049 = vunpack.c.h.b16 %v1725
    %v2050 = vunpack.c.l.b16 %v1726
    %v2051 = vunpack.c.h.b16 %v1726
    %v2052 = vunpack.c.l.b16 %v1727
    %v2053 = vunpack.c.h.b16 %v1727
    %v2054 = vunpack.c.l.b16 %v1728
    %v2055 = vunpack.c.h.b16 %v1728
    %v2056 = vunpack.c.l.b16 %v1729
    %v2057 = vunpack.c.h.b16 %v1729
    %v2058 = vunpack.c.l.b16 %v1730
    %v2059 = vunpack.c.h.b16 %v1730
    %v2060 = vunpack.c.l.b16 %v1731
    %v2061 = vunpack.c.h.b16 %v1731
    %v2062 = vunpack.c.l.b16 %v1732
    %v2063 = vunpack.c.h.b16 %v1732
    %v2064 = vunpack.c.l.b16 %v1733
    %v2065 = vunpack.c.h.b16 %v1733
    %v2066 = vunpack.c.l.b16 %v1734
    %v2067 = vunpack.c.h.b16 %v1734
    %v2068 = vunpack.c.l.b16 %v1735
    %v2069 = vunpack.c.h.b16 %v1735
    %v2070 = vunpack.c.l.b16 %v1736
    %v2071 = vunpack.c.h.b16 %v1736
    %v2072 = vunpack.c.l.b16 %v1737
    %v2073 = vunpack.c.h.b16 %v1737
    %v2074 = vunpack.c.l.b16 %v1738
    %v2075 = vunpack.c.h.b16 %v1738
    %v2076 = vunpack.c.l.b16 %v1739
    %v2077 = vunpack.c.h.b16 %v1739
    %v2078 = vunpack.c.l.b16 %v1740
    %v2079 = vunpack.c.h.b16 %v1740
    %v2080 = vunpack.c.l.b16 %v1741
    %v2081 = vunpack.c.h.b16 %v1741
    %v2082 = vunpack.c.l.b16 %v1742
    %v2083 = vunpack.c.h.b16 %v1742
    %v2084 = vunpack.c.l.b16 %v1743
    %v2085 = vunpack.c.h.b16 %v1743
    %v2086 = vunpack.c.l.b16 %v1744
    %v2087 = vunpack.c.h.b16 %v1744
    %v2088 = vunpack.c.l.b16 %v1745
    %v2089 = vunpack.c.h.b16 %v1745
    %v2090 = vunpack.c.l.b16 %v1746
    %v2091 = vunpack.c.h.b16 %v1746
    %v2092 = vunpack.c.l.b16 %v1747
    %v2093 = vunpack.c.h.b16 %v1747
    %v2094 = vunpack.c.l.b16 %v1748
    %v2095 = vunpack.c.h.b16 %v1748
    %v2096 = vunpack.c.l.b16 %v1749
    %v2097 = vunpack.c.h.b16 %v1749
    %v2098 = vunpack.c.l.b16 %v1750
    %v2099 = vunpack.c.h.b16 %v1750
    %v2100 = vunpack.c.l.b16 %v1751
    %v2101 = vunpack.c.h.b16 %v1751
    %v2102 = vunpack.c.l.b16 %v1752
    %v2103 = vunpack.c.h.b16 %v1752
    %v2104 = vunpack.c.l.b16 %v1753
    %v2105 = vunpack.c.h.b16 %v1753
    %v2106 = vunpack.c.l.b16 %v1754
    %v2107 = vunpack.c.h.b16 %v1754
    %v2108 = vunpack.c.l.b16 %v1755
    %v2109 = vunpack.c.h.b16 %v1755
    %v2110 = vunpack.c.l.b16 %v1756
    %v2111 = vunpack.c.h.b16 %v1756
    %v2112 = vunpack.c.l.b16 %v1757
    %v2113 = vunpack.c.h.b16 %v1757
    %v2114 = vunpack.c.l.b16 %v1758
    %v2115 = vunpack.c.h.b16 %v1758
    %v2116 = vunpack.c.l.b16 %v1759
    %v2117 = vunpack.c.h.b16 %v1759
    %v2118 = vunpack.c.l.b16 %v1760
    %v2119 = vunpack.c.h.b16 %v1760
    %v2120 = vunpack.c.l.b16 %v1761
    %v2121 = vunpack.c.h.b16 %v1761
    %v2122 = vunpack.c.l.b16 %v1762
    %v2123 = vunpack.c.h.b16 %v1762
    %v2124 = vunpack.c.l.b16 %v1763
    %v2125 = vunpack.c.h.b16 %v1763
    %v2126 = vunpack.c.l.b16 %v1764
    %v2127 = vunpack.c.h.b16 %v1764
    %v2128 = vunpack.c.l.b16 %v1765
    %v2129 = vunpack.c.h.b16 %v1765
    %v2130 = vunpack.c.l.b16 %v1766
    %v2131 = vunpack.c.h.b16 %v1766
    %v2132 = vunpack.c.l.b16 %v1767
    %v2133 = vunpack.c.h.b16 %v1767
    %v2134 = vunpack.c.l.b16 %v1768
    %v2135 = vunpack.c.h.b16 %v1768
    %v2136 = vunpack.c.l.b16 %v1769
    %v2137 = vunpack.c.h.b16 %v1769
    %v2138 = vunpack.c.l.b16 %v1770
    %v2139 = vunpack.c.h.b16 %v1770
    %v2140 = vunpack.c.l.b16 %v1771
    %v2141 = vunpack.c.h.b16 %v1771
    %v2142 = vunpack.c.l.b16 %v1772
    %v2143 = vunpack.c.h.b16 %v1772
    %v2144 = vunpack.c.l.b16 %v1773
    %v2145 = vunpack.c.h.b16 %v1773
    %v2146 = vunpack.c.l.b16 %v1774
    %v2147 = vunpack.c.h.b16 %v1774
    %v2148 = vunpack.c.l.b16 %v1775
    %v2149 = vunpack.c.h.b16 %v1775
    %v2150 = vunpack.c.l.b16 %v1776
    %v2151 = vunpack.c.h.b16 %v1776
    %v2152 = vunpack.c.l.b16 %v1777
    %v2153 = vunpack.c.h.b16 %v1777
    %v2154 = vunpack.c.l.b16 %v1778
    %v2155 = vunpack.c.h.b16 %v1778
    %v2156 = vunpack.c.l.b16 %v1779
    %v2157 = vunpack.c.h.b16 %v1779
    %v2158 = vunpack.c.l.b16 %v1780
    %v2159 = vunpack.c.h.b16 %v1780
    %v2160 = vunpack.c.l.b16 %v1781
    %v2161 = vunpack.c.h.b16 %v1781
    %v2162 = vunpack.c.l.b16 %v1782
    %v2163 = vunpack.c.h.b16 %v1782
    %v2164 = vunpack.c.l.b16 %v1783
    %v2165 = vunpack.c.h.b16 %v1783
    %v2166 = vunpack.c.l.b16 %v1784
    %v2167 = vunpack.c.h.b16 %v1784
    %v2168 = vunpack.c.l.b16 %v1785
    %v2169 = vunpack.c.h.b16 %v1785
    %v2170 = vunpack.c.l.b16 %v1786
    %v2171 = vunpack.c.h.b16 %v1786
    %v2172 = vunpack.c.l.b16 %v1787
    %v2173 = vunpack.c.h.b16 %v1787
    %v2174 = vunpack.c.l.b16 %v1788
    %v2175 = vunpack.c.h.b16 %v1788
    %v2176 = vunpack.c.l.b16 %v1789
    %v2177 = vunpack.c.h.b16 %v1789
    %v2178 = vunpack.c.l.b16 %v1790
    %v2179 = vunpack.c.h.b16 %v1790
    %v2180 = vunpack.c.l.b16 %v1791
    %v2181 = vunpack.c.h.b16 %v1791
    %v2182 = vunpack.c.l.b16 %v1792
    %v2183 = vunpack.c.h.b16 %v1792
    %v2184 = vunpack.c.l.b16 %v1793
    %v2185 = vunpack.c.h.b16 %v1793
    %v2186 = vunpack.c.l.b16 %v1794
    %v2187 = vunpack.c.h.b16 %v1794
    %v2188 = vunpack.c.l.b16 %v1795
    %v2189 = vunpack.c.h.b16 %v1795
    %v2190 = vpack.c.b16 %v1938, %v1934
    %v2191 = vpack.c.b16 %v1939, %v1935
    %v2192 = vpack.c.b16 %v1940, %v1936
    %v2193 = vpack.c.b16 %v1941, %v1937
    %v2194 = vpack.c.b16 %v1946, %v1942
    %v2195 = vpack.c.b16 %v1947, %v1943
    %v2196 = vpack.c.b16 %v1948, %v1944
    %v2197 = vpack.c.b16 %v1949, %v1945
    %v2198 = vpack.c.b16 %v1954, %v1950
    %v2199 = vpack.c.b16 %v1955, %v1951
    %v2200 = vpack.c.b16 %v1956, %v1952
    %v2201 = vpack.c.b16 %v1957, %v1953
    %v2202 = vpack.c.b16 %v1962, %v1958
    %v2203 = vpack.c.b16 %v1963, %v1959
    %v2204 = vpack.c.b16 %v1964, %v1960
    %v2205 = vpack.c.b16 %v1965, %v1961
    %v2206 = vpack.c.b16 %v1970, %v1966
    %v2207 = vpack.c.b16 %v1971, %v1967
    %v2208 = vpack.c.b16 %v1972, %v1968
    %v2209 = vpack.c.b16 %v1973, %v1969
    %v2210 = vpack.c.b16 %v1978, %v1974
    %v2211 = vpack.c.b16 %v1979, %v1975
    %v2212 = vpack.c.b16 %v1980, %v1976
    %v2213 = vpack.c.b16 %v1981, %v1977
    %v2214 = vpack.c.b16 %v1986, %v1982
    %v2215 = vpack.c.b16 %v1987, %v1983
    %v2216 = vpack.c.b16 %v1988, %v1984
    %v2217 = vpack.c.b16 %v1989, %v1985
    %v2218 = vpack.c.b16 %v1994, %v1990
    %v2219 = vpack.c.b16 %v1995, %v1991
    %v2220 = vpack.c.b16 %v1996, %v1992
    %v2221 = vpack.c.b16 %v1997, %v1993
    %v2222 = vpack.c.b16 %v2002, %v1998
    %v2223 = vpack.c.b16 %v2003, %v1999
    %v2224 = vpack.c.b16 %v2004, %v2000
    %v2225 = vpack.c.b16 %v2005, %v2001
    %v2226 = vpack.c.b16 %v2010, %v2006
    %v2227 = vpack.c.b16 %v2011, %v2007
    %v2228 = vpack.c.b16 %v2012, %v2008
    %v2229 = vpack.c.b16 %v2013, %v2009
    %v2230 = vpack.c.b16 %v2018, %v2014
    %v2231 = vpack.c.b16 %v2019, %v2015
    %v2232 = vpack.c.b16 %v2020, %v2016
    %v2233 = vpack.c.b16 %v2021, %v2017
    %v2234 = vpack.c.b16 %v2026, %v2022
    %v2235 = vpack.c.b16 %v2027, %v2023
    %v2236 = vpack.c.b16 %v2028, %v2024
    %v2237 = vpack.c.b16 %v2029, %v2025
    %v2238 = vpack.c.b16 %v2034, %v2030
    %v2239 = vpack.c.b16 %v2035, %v2031
    %v2240 = vpack.c.b16 %v2036, %v2032
    %v2241 = vpack.c.b16 %v2037, %v2033
    %v2242 = vpack.c.b16 %v2042, %v2038
    %v2243 = vpack.c.b16 %v2043, %v2039
    %v2244 = vpack.c.b16 %v2044, %v2040
    %v2245 = vpack.c.b16 %v2045, %v2041
    %v2246 = vpack.c.b16 %v2050, %v2046
    %v2247 = vpack.c.b16 %v2051, %v2047
    %v2248 = vpack.c.b16 %v2052, %v2048
    %v2249 = vpack.c.b16 %v2053, %v2049
    %v2250 = vpack.c.b16 %v2058, %v2054
    %v2251 = vpack.c.b16 %v2059, %v2055
    %v2252 = vpack.c.b16 %v2060, %v2056
    %v2253 = vpack.c.b16 %v2061, %v2057
    %v2254 = vpack.c.b16 %v2066, %v2062
    %v2255 = vpack.c.b16 %v2067, %v2063
    %v2256 = vpack.c.b16 %v2068, %v2064
    %v2257 = vpack.c.b16 %v2069, %v2065
    %v2258 = vpack.c.b16 %v2074, %v2070
    %v2259 = vpack.c.b16 %v2075, %v2071
    %v2260 = vpack.c.b16 %v2076, %v2072
    %v2261 = vpack.c.b16 %v2077, %v2073
    %v2262 = vpack.c.b16 %v2082, %v2078
    %v2263 = vpack.c.b16 %v2083, %v2079
    %v2264 = vpack.c.b16 %v2084, %v2080
    %v2265 = vpack.c.b16 %v2085, %v2081
    %v2266 = vpack.c.b16 %v2090, %v2086
    %v2267 = vpack.c.b16 %v2091, %v2087
    %v2268 = vpack.c.b16 %v2092, %v2088
    %v2269 = vpack.c.b16 %v2093, %v2089
    %v2270 = vpack.c.b16 %v2098, %v2094
    %v2271 = vpack.c.b16 %v2099, %v2095
    %v2272 = vpack.c.b16 %v2100, %v2096
    %v2273 = vpack.c.b16 %v2101, %v2097
    %v2274 = vpack.c.b16 %v2106, %v2102
    %v2275 = vpack.c.b16 %v2107, %v2103
    %v2276 = vpack.c.b16 %v2108, %v2104
    %v2277 = vpack.c.b16 %v2109, %v2105
    %v2278 = vpack.c.b16 %v2114, %v2110
    %v2279 = vpack.c.b16 %v2115, %v2111
    %v2280 = vpack.c.b16 %v2116, %v2112
    %v2281 = vpack.c.b16 %v2117, %v2113
    %v2282 = vpack.c.b16 %v2122, %v2118
    %v2283 = vpack.c.b16 %v2123, %v2119
    %v2284 = vpack.c.b16 %v2124, %v2120
    %v2285 = vpack.c.b16 %v2125, %v2121
    %v2286 = vpack.c.b16 %v2130, %v2126
    %v2287 = vpack.c.b16 %v2131, %v2127
    %v2288 = vpack.c.b16 %v2132, %v2128
    %v2289 = vpack.c.b16 %v2133, %v2129
    %v2290 = vpack.c.b16 %v2138, %v2134
    %v2291 = vpack.c.b16 %v2139, %v2135
    %v2292 = vpack.c.b16 %v2140, %v2136
    %v2293 = vpack.c.b16 %v2141, %v2137
    %v2294 = vpack.c.b16 %v2146, %v2142
    %v2295 = vpack.c.b16 %v2147, %v2143
    %v2296 = vpack.c.b16 %v2148, %v2144
    %v2297 = vpack.c.b16 %v2149, %v2145
    %v2298 = vpack.c.b16 %v2154, %v2150
    %v2299 = vpack.c.b16 %v2155, %v2151
    %v2300 = vpack.c.b16 %v2156, %v2152
    %v2301 = vpack.c.b16 %v2157, %v2153
    %v2302 = vpack.c.b16 %v2162, %v2158
    %v2303 = vpack.c.b16 %v2163, %v2159
    %v2304 = vpack.c.b16 %v2164, %v2160
    %v2305 = vpack.c.b16 %v2165, %v2161
    %v2306 = vpack.c.b16 %v2170, %v2166
    %v2307 = vpack.c.b16 %v2171, %v2167
    %v2308 = vpack.c.b16 %v2172, %v2168
    %v2309 = vpack.c.b16 %v2173, %v2169
    %v2310 = vpack.c.b16 %v2178, %v2174
    %v2311 = vpack.c.b16 %v2179, %v2175
    %v2312 = vpack.c.b16 %v2180, %v2176
    %v2313 = vpack.c.b16 %v2181, %v2177
    %v2314 = vpack.c.b16 %v2186, %v2182
    %v2315 = vpack.c.b16 %v2187, %v2183
    %v2316 = vpack.c.b16 %v2188, %v2184
    %v2317 = vpack.c.b16 %v2189, %v2185
    %2446 = vmatpush.bf16.msra.mxu0 %v2218
    %2447 = vmatpush.bf16.msra.mxu0 %v2214
    %2448 = vmatpush.bf16.msra.mxu0 %v2210
    %2449 = vmatpush.bf16.msra.mxu0 %v2206
    %2450 = vmatpush.bf16.msra.mxu0 %v2202
    %2451 = vmatpush.bf16.msra.mxu0 %v2198
    %2452 = vmatpush.bf16.msra.mxu0 %v2194
    %2453 = vmatpush.bf16.msra.mxu0 %v2190
    %2454 = vmatmul.bf16.gmra.mxu0 %v1664
    %v2455 = vpop.f32.mrf.mxu0
    %v2456 = vadd.f32 %v1798, %v2455
    %v2457 = vpop.f32.mrf.mxu0
    %2458 = vdwg.mxu0
    %2459 = vmatpush.bf16.msra.mxu0 %v2250
    %2460 = vmatpush.bf16.msra.mxu0 %v2246
    %2461 = vmatpush.bf16.msra.mxu0 %v2242
    %2462 = vmatpush.bf16.msra.mxu0 %v2238
    %2463 = vmatpush.bf16.msra.mxu0 %v2234
    %2464 = vmatpush.bf16.msra.mxu0 %v2230
    %2465 = vmatpush.bf16.msra.mxu0 %v2226
    %2466 = vmatpush.bf16.msra.mxu0 %v2222
    %2467 = vmatmul.bf16.gmra.mxu0 %v1665
    %v2468 = vpop.f32.mrf.mxu0
    %v2469 = vadd.f32 %v2456, %v2468
    %v2470 = vpop.f32.mrf.mxu0
    %2471 = vdwg.mxu0
    %2472 = vmatpush.bf16.msra.mxu0 %v2282
    %2473 = vmatpush.bf16.msra.mxu0 %v2278
    %2474 = vmatpush.bf16.msra.mxu0 %v2274
    %2475 = vmatpush.bf16.msra.mxu0 %v2270
    %2476 = vmatpush.bf16.msra.mxu0 %v2266
    %2477 = vmatpush.bf16.msra.mxu0 %v2262
    %2478 = vmatpush.bf16.msra.mxu0 %v2258
    %2479 = vmatpush.bf16.msra.mxu0 %v2254
    %2480 = vmatmul.bf16.gmra.mxu0 %v1666
    %v2481 = vpop.f32.mrf.mxu0
    %v2482 = vadd.f32 %v2469, %v2481
    %v2483 = vpop.f32.mrf.mxu0
    %2484 = vdwg.mxu0
    %2485 = vmatpush.bf16.msra.mxu0 %v2314
    %2486 = vmatpush.bf16.msra.mxu0 %v2310
    %2487 = vmatpush.bf16.msra.mxu0 %v2306
    %2488 = vmatpush.bf16.msra.mxu0 %v2302
    %2489 = vmatpush.bf16.msra.mxu0 %v2298
    %2490 = vmatpush.bf16.msra.mxu0 %v2294
    %2491 = vmatpush.bf16.msra.mxu0 %v2290
    %2492 = vmatpush.bf16.msra.mxu0 %v2286
    %2493 = vmatmul.bf16.gmra.mxu0 %v1667
    %v2494 = vpop.f32.mrf.mxu0
    %v2495 = vadd.f32 %v2482, %v2494
    %v2496 = vpop.f32.mrf.mxu0
    %2497 = vdwg.mxu0
    %2498 = vmatpush.bf16.msra.mxu0 %v2219
    %2499 = vmatpush.bf16.msra.mxu0 %v2215
    %2500 = vmatpush.bf16.msra.mxu0 %v2211
    %2501 = vmatpush.bf16.msra.mxu0 %v2207
    %2502 = vmatpush.bf16.msra.mxu0 %v2203
    %2503 = vmatpush.bf16.msra.mxu0 %v2199
    %2504 = vmatpush.bf16.msra.mxu0 %v2195
    %2505 = vmatpush.bf16.msra.mxu0 %v2191
    %2506 = vmatmul.bf16.gmra.mxu0 %v1664
    %v2507 = vpop.f32.mrf.mxu0
    %v2508 = vadd.f32 %v1799, %v2507
    %v2509 = vpop.f32.mrf.mxu0
    %2510 = vdwg.mxu0
    %2511 = vmatpush.bf16.msra.mxu0 %v2251
    %2512 = vmatpush.bf16.msra.mxu0 %v2247
    %2513 = vmatpush.bf16.msra.mxu0 %v2243
    %2514 = vmatpush.bf16.msra.mxu0 %v2239
    %2515 = vmatpush.bf16.msra.mxu0 %v2235
    %2516 = vmatpush.bf16.msra.mxu0 %v2231
    %2517 = vmatpush.bf16.msra.mxu0 %v2227
    %2518 = vmatpush.bf16.msra.mxu0 %v2223
    %2519 = vmatmul.bf16.gmra.mxu0 %v1665
    %v2520 = vpop.f32.mrf.mxu0
    %v2521 = vadd.f32 %v2508, %v2520
    %v2522 = vpop.f32.mrf.mxu0
    %2523 = vdwg.mxu0
    %2524 = vmatpush.bf16.msra.mxu0 %v2283
    %2525 = vmatpush.bf16.msra.mxu0 %v2279
    %2526 = vmatpush.bf16.msra.mxu0 %v2275
    %2527 = vmatpush.bf16.msra.mxu0 %v2271
    %2528 = vmatpush.bf16.msra.mxu0 %v2267
    %2529 = vmatpush.bf16.msra.mxu0 %v2263
    %2530 = vmatpush.bf16.msra.mxu0 %v2259
    %2531 = vmatpush.bf16.msra.mxu0 %v2255
    %2532 = vmatmul.bf16.gmra.mxu0 %v1666
    %v2533 = vpop.f32.mrf.mxu0
    %v2534 = vadd.f32 %v2521, %v2533
    %v2535 = vpop.f32.mrf.mxu0
    %2536 = vdwg.mxu0
    %2537 = vmatpush.bf16.msra.mxu0 %v2315
    %2538 = vmatpush.bf16.msra.mxu0 %v2311
    %2539 = vmatpush.bf16.msra.mxu0 %v2307
    %2540 = vmatpush.bf16.msra.mxu0 %v2303
    %2541 = vmatpush.bf16.msra.mxu0 %v2299
    %2542 = vmatpush.bf16.msra.mxu0 %v2295
    %2543 = vmatpush.bf16.msra.mxu0 %v2291
    %2544 = vmatpush.bf16.msra.mxu0 %v2287
    %2545 = vmatmul.bf16.gmra.mxu0 %v1667
    %v2546 = vpop.f32.mrf.mxu0
    %v2547 = vadd.f32 %v2534, %v2546
    %v2548 = vpop.f32.mrf.mxu0
    %2549 = vdwg.mxu0
    %2550 = vmatpush.bf16.msra.mxu0 %v2220
    %2551 = vmatpush.bf16.msra.mxu0 %v2216
    %2552 = vmatpush.bf16.msra.mxu0 %v2212
    %2553 = vmatpush.bf16.msra.mxu0 %v2208
    %2554 = vmatpush.bf16.msra.mxu0 %v2204
    %2555 = vmatpush.bf16.msra.mxu0 %v2200
    %2556 = vmatpush.bf16.msra.mxu0 %v2196
    %2557 = vmatpush.bf16.msra.mxu0 %v2192
    %2558 = vmatmul.bf16.gmra.mxu0 %v1664
    %v2559 = vpop.f32.mrf.mxu0
    %v2560 = vadd.f32 %v1800, %v2559
    %v2561 = vpop.f32.mrf.mxu0
    %2562 = vdwg.mxu0
    %2563 = vmatpush.bf16.msra.mxu0 %v2252
    %2564 = vmatpush.bf16.msra.mxu0 %v2248
    %2565 = vmatpush.bf16.msra.mxu0 %v2244
    %2566 = vmatpush.bf16.msra.mxu0 %v2240
    %2567 = vmatpush.bf16.msra.mxu0 %v2236
    %2568 = vmatpush.bf16.msra.mxu0 %v2232
    %2569 = vmatpush.bf16.msra.mxu0 %v2228
    %2570 = vmatpush.bf16.msra.mxu0 %v2224
    %2571 = vmatmul.bf16.gmra.mxu0 %v1665
    %v2572 = vpop.f32.mrf.mxu0
    %v2573 = vadd.f32 %v2560, %v2572
    %v2574 = vpop.f32.mrf.mxu0
    %2575 = vdwg.mxu0
    %2576 = vmatpush.bf16.msra.mxu0 %v2284
    %2577 = vmatpush.bf16.msra.mxu0 %v2280
    %2578 = vmatpush.bf16.msra.mxu0 %v2276
    %2579 = vmatpush.bf16.msra.mxu0 %v2272
    %2580 = vmatpush.bf16.msra.mxu0 %v2268
    %2581 = vmatpush.bf16.msra.mxu0 %v2264
    %2582 = vmatpush.bf16.msra.mxu0 %v2260
    %2583 = vmatpush.bf16.msra.mxu0 %v2256
    %2584 = vmatmul.bf16.gmra.mxu0 %v1666
    %v2585 = vpop.f32.mrf.mxu0
    %v2586 = vadd.f32 %v2573, %v2585
    %v2587 = vpop.f32.mrf.mxu0
    %2588 = vdwg.mxu0
    %2589 = vmatpush.bf16.msra.mxu0 %v2316
    %2590 = vmatpush.bf16.msra.mxu0 %v2312
    %2591 = vmatpush.bf16.msra.mxu0 %v2308
    %2592 = vmatpush.bf16.msra.mxu0 %v2304
    %2593 = vmatpush.bf16.msra.mxu0 %v2300
    %2594 = vmatpush.bf16.msra.mxu0 %v2296
    %2595 = vmatpush.bf16.msra.mxu0 %v2292
    %2596 = vmatpush.bf16.msra.mxu0 %v2288
    %2597 = vmatmul.bf16.gmra.mxu0 %v1667
    %v2598 = vpop.f32.mrf.mxu0
    %v2599 = vadd.f32 %v2586, %v2598
    %v2600 = vpop.f32.mrf.mxu0
    %2601 = vdwg.mxu0
    %2602 = vmatpush.bf16.msra.mxu0 %v2221
    %2603 = vmatpush.bf16.msra.mxu0 %v2217
    %2604 = vmatpush.bf16.msra.mxu0 %v2213
    %2605 = vmatpush.bf16.msra.mxu0 %v2209
    %2606 = vmatpush.bf16.msra.mxu0 %v2205
    %2607 = vmatpush.bf16.msra.mxu0 %v2201
    %2608 = vmatpush.bf16.msra.mxu0 %v2197
    %2609 = vmatpush.bf16.msra.mxu0 %v2193
    %2610 = vmatmul.bf16.gmra.mxu0 %v1664
    %v2611 = vpop.f32.mrf.mxu0
    %v2612 = vadd.f32 %v1801, %v2611
    %v2613 = vpop.f32.mrf.mxu0
    %2614 = vdwg.mxu0
    %2615 = vmatpush.bf16.msra.mxu0 %v2253
    %2616 = vmatpush.bf16.msra.mxu0 %v2249
    %2617 = vmatpush.bf16.msra.mxu0 %v2245
    %2618 = vmatpush.bf16.msra.mxu0 %v2241
    %2619 = vmatpush.bf16.msra.mxu0 %v2237
    %2620 = vmatpush.bf16.msra.mxu0 %v2233
    %2621 = vmatpush.bf16.msra.mxu0 %v2229
    %2622 = vmatpush.bf16.msra.mxu0 %v2225
    %2623 = vmatmul.bf16.gmra.mxu0 %v1665
    %v2624 = vpop.f32.mrf.mxu0
    %v2625 = vadd.f32 %v2612, %v2624
    %v2626 = vpop.f32.mrf.mxu0
    %2627 = vdwg.mxu0
    %2628 = vmatpush.bf16.msra.mxu0 %v2285
    %2629 = vmatpush.bf16.msra.mxu0 %v2281
    %2630 = vmatpush.bf16.msra.mxu0 %v2277
    %2631 = vmatpush.bf16.msra.mxu0 %v2273
    %2632 = vmatpush.bf16.msra.mxu0 %v2269
    %2633 = vmatpush.bf16.msra.mxu0 %v2265
    %2634 = vmatpush.bf16.msra.mxu0 %v2261
    %2635 = vmatpush.bf16.msra.mxu0 %v2257
    %2636 = vmatmul.bf16.gmra.mxu0 %v1666
    %v2637 = vpop.f32.mrf.mxu0
    %v2638 = vadd.f32 %v2625, %v2637
    %v2639 = vpop.f32.mrf.mxu0
    %2640 = vdwg.mxu0
    %2641 = vmatpush.bf16.msra.mxu0 %v2317
    %2642 = vmatpush.bf16.msra.mxu0 %v2313
    %2643 = vmatpush.bf16.msra.mxu0 %v2309
    %2644 = vmatpush.bf16.msra.mxu0 %v2305
    %2645 = vmatpush.bf16.msra.mxu0 %v2301
    %2646 = vmatpush.bf16.msra.mxu0 %v2297
    %2647 = vmatpush.bf16.msra.mxu0 %v2293
    %2648 = vmatpush.bf16.msra.mxu0 %v2289
    %2649 = vmatmul.bf16.gmra.mxu0 %v1667
    %v2650 = vpop.f32.mrf.mxu0
    %v2651 = vadd.f32 %v2638, %v2650
    %v2652 = vpop.f32.mrf.mxu0
    %2653 = vdwg.mxu0
    %v2654 = vmax.f32 %v2495, 0.0
    %v2655 = vmax.f32 %v2547, 0.0
    %v2656 = vmax.f32 %v2599, 0.0
    %v2657 = vmax.f32 %v2651, 0.0
    %v2658 = vpack.c.bf16 %v2654, %v2654
    %v2659 = vpack.c.bf16 %v2655, %v2655
    %v2660 = vpack.c.bf16 %v2656, %v2656
    %v2661 = vpack.c.bf16 %v2657, %v2657
    %v2662 = vld [vmem:[%s7] sm:$0xf]
    %v2663 = vld [vmem:[%s7 + $0x4] sm:$0xf]
    %v2664 = vld [vmem:[%s7 + $0x8] sm:$0xf]
    %v2665 = vld [vmem:[%s7 + $0xc] sm:$0xf]
    %v2666 = vld [vmem:[%s7 + $0x10] sm:$0xf]
    %v2667 = vld [vmem:[%s7 + $0x14] sm:$0xf]
    %v2668 = vld [vmem:[%s7 + $0x18] sm:$0xf]
    %v2669 = vld [vmem:[%s7 + $0x1c] sm:$0xf]
    %v2670 = vld [vmem:[%s7 + $0x20] sm:$0xf]
    %v2671 = vld [vmem:[%s7 + $0x24] sm:$0xf]
    %v2672 = vld [vmem:[%s7 + $0x28] sm:$0xf]
    %v2673 = vld [vmem:[%s7 + $0x2c] sm:$0xf]
    %v2674 = vld [vmem:[%s7 + $0x30] sm:$0xf]
    %v2675 = vld [vmem:[%s7 + $0x34] sm:$0xf]
    %v2676 = vld [vmem:[%s7 + $0x38] sm:$0xf]
    %v2677 = vld [vmem:[%s7 + $0x3c] sm:$0xf]
    %v2678 = vld [vmem:[%s7 + $0x40] sm:$0xf]
    %v2679 = vld [vmem:[%s7 + $0x44] sm:$0xf]
    %v2680 = vld [vmem:[%s7 + $0x48] sm:$0xf]
    %v2681 = vld [vmem:[%s7 + $0x4c] sm:$0xf]
    %v2682 = vld [vmem:[%s7 + $0x50] sm:$0xf]
    %v2683 = vld [vmem:[%s7 + $0x54] sm:$0xf]
    %v2684 = vld [vmem:[%s7 + $0x58] sm:$0xf]
    %v2685 = vld [vmem:[%s7 + $0x5c] sm:$0xf]
    %v2686 = vld [vmem:[%s7 + $0x60] sm:$0xf]
    %v2687 = vld [vmem:[%s7 + $0x64] sm:$0xf]
    %v2688 = vld [vmem:[%s7 + $0x68] sm:$0xf]
    %v2689 = vld [vmem:[%s7 + $0x6c] sm:$0xf]
    %v2690 = vld [vmem:[%s7 + $0x70] sm:$0xf]
    %v2691 = vld [vmem:[%s7 + $0x74] sm:$0xf]
    %v2692 = vld [vmem:[%s7 + $0x78] sm:$0xf]
    %v2693 = vld [vmem:[%s7 + $0x7c] sm:$0xf]
    %v2694 = vld [vmem:[%s7 + $0x80] sm:$0xf]
    %v2695 = vld [vmem:[%s7 + $0x84] sm:$0xf]
    %v2696 = vld [vmem:[%s7 + $0x88] sm:$0xf]
    %v2697 = vld [vmem:[%s7 + $0x8c] sm:$0xf]
    %v2698 = vld [vmem:[%s7 + $0x90] sm:$0xf]
    %v2699 = vld [vmem:[%s7 + $0x94] sm:$0xf]
    %v2700 = vld [vmem:[%s7 + $0x98] sm:$0xf]
    %v2701 = vld [vmem:[%s7 + $0x9c] sm:$0xf]
    %v2702 = vld [vmem:[%s7 + $0xa0] sm:$0xf]
    %v2703 = vld [vmem:[%s7 + $0xa4] sm:$0xf]
    %v2704 = vld [vmem:[%s7 + $0xa8] sm:$0xf]
    %v2705 = vld [vmem:[%s7 + $0xac] sm:$0xf]
    %v2706 = vld [vmem:[%s7 + $0xb0] sm:$0xf]
    %v2707 = vld [vmem:[%s7 + $0xb4] sm:$0xf]
    %v2708 = vld [vmem:[%s7 + $0xb8] sm:$0xf]
    %v2709 = vld [vmem:[%s7 + $0xbc] sm:$0xf]
    %v2710 = vld [vmem:[%s7 + $0xc0] sm:$0xf]
    %v2711 = vld [vmem:[%s7 + $0xc4] sm:$0xf]
    %v2712 = vld [vmem:[%s7 + $0xc8] sm:$0xf]
    %v2713 = vld [vmem:[%s7 + $0xcc] sm:$0xf]
    %v2714 = vld [vmem:[%s7 + $0xd0] sm:$0xf]
    %v2715 = vld [vmem:[%s7 + $0xd4] sm:$0xf]
    %v2716 = vld [vmem:[%s7 + $0xd8] sm:$0xf]
    %v2717 = vld [vmem:[%s7 + $0xdc] sm:$0xf]
    %v2718 = vld [vmem:[%s7 + $0xe0] sm:$0xf]
    %v2719 = vld [vmem:[%s7 + $0xe4] sm:$0xf]
    %v2720 = vld [vmem:[%s7 + $0xe8] sm:$0xf]
    %v2721 = vld [vmem:[%s7 + $0xec] sm:$0xf]
    %v2722 = vld [vmem:[%s7 + $0xf0] sm:$0xf]
    %v2723 = vld [vmem:[%s7 + $0xf4] sm:$0xf]
    %v2724 = vld [vmem:[%s7 + $0xf8] sm:$0xf]
    %v2725 = vld [vmem:[%s7 + $0xfc] sm:$0xf]
    %v2726 = vld [vmem:[#allocation2] sm:$0x1]
    %v2728 = vperm.slane %v2726, 0
    %v2794 = vunpack.c.l.b16 %v2662
    %v2795 = vunpack.c.l.b16 %v2663
    %v2796 = vunpack.c.l.b16 %v2664
    %v2797 = vunpack.c.l.b16 %v2665
    %v2798 = vunpack.c.l.b16 %v2666
    %v2799 = vunpack.c.l.b16 %v2667
    %v2800 = vunpack.c.l.b16 %v2668
    %v2801 = vunpack.c.l.b16 %v2669
    %v2802 = vunpack.c.l.b16 %v2670
    %v2803 = vunpack.c.l.b16 %v2671
    %v2804 = vunpack.c.l.b16 %v2672
    %v2805 = vunpack.c.l.b16 %v2673
    %v2806 = vunpack.c.l.b16 %v2674
    %v2807 = vunpack.c.l.b16 %v2675
    %v2808 = vunpack.c.l.b16 %v2676
    %v2809 = vunpack.c.l.b16 %v2677
    %v2810 = vunpack.c.l.b16 %v2678
    %v2811 = vunpack.c.l.b16 %v2679
    %v2812 = vunpack.c.l.b16 %v2680
    %v2813 = vunpack.c.l.b16 %v2681
    %v2814 = vunpack.c.l.b16 %v2682
    %v2815 = vunpack.c.l.b16 %v2683
    %v2816 = vunpack.c.l.b16 %v2684
    %v2817 = vunpack.c.l.b16 %v2685
    %v2818 = vunpack.c.l.b16 %v2686
    %v2819 = vunpack.c.l.b16 %v2687
    %v2820 = vunpack.c.l.b16 %v2688
    %v2821 = vunpack.c.l.b16 %v2689
    %v2822 = vunpack.c.l.b16 %v2690
    %v2823 = vunpack.c.l.b16 %v2691
    %v2824 = vunpack.c.l.b16 %v2692
    %v2825 = vunpack.c.l.b16 %v2693
    %v2826 = vunpack.c.l.b16 %v2694
    %v2827 = vunpack.c.l.b16 %v2695
    %v2828 = vunpack.c.l.b16 %v2696
    %v2829 = vunpack.c.l.b16 %v2697
    %v2830 = vunpack.c.l.b16 %v2698
    %v2831 = vunpack.c.l.b16 %v2699
    %v2832 = vunpack.c.l.b16 %v2700
    %v2833 = vunpack.c.l.b16 %v2701
    %v2834 = vunpack.c.l.b16 %v2702
    %v2835 = vunpack.c.l.b16 %v2703
    %v2836 = vunpack.c.l.b16 %v2704
    %v2837 = vunpack.c.l.b16 %v2705
    %v2838 = vunpack.c.l.b16 %v2706
    %v2839 = vunpack.c.l.b16 %v2707
    %v2840 = vunpack.c.l.b16 %v2708
    %v2841 = vunpack.c.l.b16 %v2709
    %v2842 = vunpack.c.l.b16 %v2710
    %v2843 = vunpack.c.l.b16 %v2711
    %v2844 = vunpack.c.l.b16 %v2712
    %v2845 = vunpack.c.l.b16 %v2713
    %v2846 = vunpack.c.l.b16 %v2714
    %v2847 = vunpack.c.l.b16 %v2715
    %v2848 = vunpack.c.l.b16 %v2716
    %v2849 = vunpack.c.l.b16 %v2717
    %v2850 = vunpack.c.l.b16 %v2718
    %v2851 = vunpack.c.l.b16 %v2719
    %v2852 = vunpack.c.l.b16 %v2720
    %v2853 = vunpack.c.l.b16 %v2721
    %v2854 = vunpack.c.l.b16 %v2722
    %v2855 = vunpack.c.l.b16 %v2723
    %v2856 = vunpack.c.l.b16 %v2724
    %v2857 = vunpack.c.l.b16 %v2725
    %v2858 = vpack.c.b16 %v2795, %v2794
    %v2859 = vpack.c.b16 %v2797, %v2796
    %v2860 = vpack.c.b16 %v2799, %v2798
    %v2861 = vpack.c.b16 %v2801, %v2800
    %v2862 = vpack.c.b16 %v2803, %v2802
    %v2863 = vpack.c.b16 %v2805, %v2804
    %v2864 = vpack.c.b16 %v2807, %v2806
    %v2865 = vpack.c.b16 %v2809, %v2808
    %v2866 = vpack.c.b16 %v2811, %v2810
    %v2867 = vpack.c.b16 %v2813, %v2812
    %v2868 = vpack.c.b16 %v2815, %v2814
    %v2869 = vpack.c.b16 %v2817, %v2816
    %v2870 = vpack.c.b16 %v2819, %v2818
    %v2871 = vpack.c.b16 %v2821, %v2820
    %v2872 = vpack.c.b16 %v2823, %v2822
    %v2873 = vpack.c.b16 %v2825, %v2824
    %v2874 = vpack.c.b16 %v2827, %v2826
    %v2875 = vpack.c.b16 %v2829, %v2828
    %v2876 = vpack.c.b16 %v2831, %v2830
    %v2877 = vpack.c.b16 %v2833, %v2832
    %v2878 = vpack.c.b16 %v2835, %v2834
    %v2879 = vpack.c.b16 %v2837, %v2836
    %v2880 = vpack.c.b16 %v2839, %v2838
    %v2881 = vpack.c.b16 %v2841, %v2840
    %v2882 = vpack.c.b16 %v2843, %v2842
    %v2883 = vpack.c.b16 %v2845, %v2844
    %v2884 = vpack.c.b16 %v2847, %v2846
    %v2885 = vpack.c.b16 %v2849, %v2848
    %v2886 = vpack.c.b16 %v2851, %v2850
    %v2887 = vpack.c.b16 %v2853, %v2852
    %v2888 = vpack.c.b16 %v2855, %v2854
    %v2889 = vpack.c.b16 %v2857, %v2856
    %2922 = vmatpush.bf16.msra.mxu0 %v2865
    %2923 = vmatpush.bf16.msra.mxu0 %v2864
    %2924 = vmatpush.bf16.msra.mxu0 %v2863
    %2925 = vmatpush.bf16.msra.mxu0 %v2862
    %2926 = vmatpush.bf16.msra.mxu0 %v2861
    %2927 = vmatpush.bf16.msra.mxu0 %v2860
    %2928 = vmatpush.bf16.msra.mxu0 %v2859
    %2929 = vmatpush.bf16.msra.mxu0 %v2858
    %2930 = vmatmul.bf16.gmra.mxu0 %v2658
    %v2931 = vpop.f32.mrf.mxu0
    %v2932 = vadd.f32 %v2728, %v2931
    %v2933 = vpop.f32.mrf.mxu0
    %2934 = vdwg.mxu0
    %2935 = vmatpush.bf16.msra.mxu0 %v2873
    %2936 = vmatpush.bf16.msra.mxu0 %v2872
    %2937 = vmatpush.bf16.msra.mxu0 %v2871
    %2938 = vmatpush.bf16.msra.mxu0 %v2870
    %2939 = vmatpush.bf16.msra.mxu0 %v2869
    %2940 = vmatpush.bf16.msra.mxu0 %v2868
    %2941 = vmatpush.bf16.msra.mxu0 %v2867
    %2942 = vmatpush.bf16.msra.mxu0 %v2866
    %2943 = vmatmul.bf16.gmra.mxu0 %v2659
    %v2944 = vpop.f32.mrf.mxu0
    %v2945 = vadd.f32 %v2932, %v2944
    %v2946 = vpop.f32.mrf.mxu0
    %2947 = vdwg.mxu0
    %2948 = vmatpush.bf16.msra.mxu0 %v2881
    %2949 = vmatpush.bf16.msra.mxu0 %v2880
    %2950 = vmatpush.bf16.msra.mxu0 %v2879
    %2951 = vmatpush.bf16.msra.mxu0 %v2878
    %2952 = vmatpush.bf16.msra.mxu0 %v2877
    %2953 = vmatpush.bf16.msra.mxu0 %v2876
    %2954 = vmatpush.bf16.msra.mxu0 %v2875
    %2955 = vmatpush.bf16.msra.mxu0 %v2874
    %2956 = vmatmul.bf16.gmra.mxu0 %v2660
    %v2957 = vpop.f32.mrf.mxu0
    %v2958 = vadd.f32 %v2945, %v2957
    %v2959 = vpop.f32.mrf.mxu0
    %2960 = vdwg.mxu0
    %2961 = vmatpush.bf16.msra.mxu0 %v2889
    %2962 = vmatpush.bf16.msra.mxu0 %v2888
    %2963 = vmatpush.bf16.msra.mxu0 %v2887
    %2964 = vmatpush.bf16.msra.mxu0 %v2886
    %2965 = vmatpush.bf16.msra.mxu0 %v2885
    %2966 = vmatpush.bf16.msra.mxu0 %v2884
    %2967 = vmatpush.bf16.msra.mxu0 %v2883
    %2968 = vmatpush.bf16.msra.mxu0 %v2882
    %2969 = vmatmul.bf16.gmra.mxu0 %v2661
    %v2970 = vpop.f32.mrf.mxu0
    %v2971 = vadd.f32 %v2958, %v2970
    %v2972 = vpop.f32.mrf.mxu0
    %2973 = vdwg.mxu0
    %vm2974 = vcmask 7168
    %2975 = vst.msk [vmem:[%s9] sm:$0xff] %vm2974, %v2971
    // Predicated region
    $region50: #{forward.1} parent=1 // pred_check
      _
    $region51: #{forward.1} parent=1 // pred_check_branch
      %2977 = sbr.rel (0) target = $region53
    $region52: #{forward.1} parent=1 // pred_region
      _
    $region53: #{forward.1} parent=1 // pred_fallthru
      _
    // Predicated region
    $region54: #{forward.1} parent=1 // pred_check
      _
    $region55: #{forward.1} parent=1 // pred_check_branch
      %2979 = sbr.rel (0) target = $region57
    $region56: #{forward.1} parent=1 // pred_region
      _
    $region57: #{forward.1} parent=1 // pred_fallthru
      _
    %2980 = vsyncpa [#allocation4], 1
    %2981 = vsyncpa [#allocation6], 1

</llo_original>
